<compile_context>
chip_gen: v7x
topology: tpu7x:2x2x1
jax: 0.10.0
libtpu: 0.0.40
codegen_flags: <defaults>
</compile_context>

<pallas_src>
import functools

import jax
import jax.numpy as jnp
from jax.experimental import pallas as pl
from jax.experimental.pallas import tpu as pltpu


def _round_up(x, m):
    return (x + m - 1) // m * m


def critic_kernel(x_ref, w1t_ref, b1_ref, w2t_ref, b2_ref, w3_ref, b3_ref, out_ref,
                  *, mxu_dtype, act_dtype, precision):
    """One batch tile of the Critic MLP in feature-major (batch-on-lanes) layout.

    x_ref   : (tb, d0)  obs tile (batch-major as produced upstream)
    w1t_ref : (n1, d0)  W1^T            (mxu_dtype)
    b1_ref  : (n1, 1)   column bias     (act_dtype)
    w2t_ref : (n2, n1)  W2^T            (mxu_dtype)
    b2_ref  : (n2, 1)   column bias     (act_dtype)
    w3_ref  : (1, n2)   value-head row  (mxu_dtype)
    b3_ref  : (1,)      scalar bias in SMEM (f32)
    out_ref : (1, tb)   lane-dense value row (f32)
    """
    # One small transpose per tile: (tb, d0) -> (d0, tb). d0 is the short axis so
    # this is cheap on the XLU; everything downstream is lane-dense (features on
    # sublanes, batch on the 128-wide lanes) and needs no further transposes.
    # If the obs producer can emit (d0, B) feature-major directly, drop this.
    xt = x_ref[...].T.astype(mxu_dtype)                            # (d0, tb)

    # Layer 1: Linear + tanh. MXU matmul, f32 accumulation; bias add + tanh in
    # act_dtype (bf16 on v6e/v7x where the EUP has bf16 at ~2x the f32 rate).
    a1 = jnp.dot(w1t_ref[...], xt,
                 preferred_element_type=jnp.float32, precision=precision)
    h1 = jnp.tanh(a1.astype(act_dtype) + b1_ref[...])              # (n1, tb)

    # Layer 2: Linear + tanh.
    a2 = jnp.dot(w2t_ref[...], h1.astype(mxu_dtype),
                 preferred_element_type=jnp.float32, precision=precision)
    h2 = jnp.tanh(a2.astype(act_dtype) + b2_ref[...])              # (n2, tb)

    # Value head (out_features == 1): (1, n2) @ (n2, tb) -> lane-dense (1, tb) row,
    # f32 accumulation, scalar bias from SMEM. No masked single-lane stores.
    v = jnp.dot(w3_ref[...], h2.astype(mxu_dtype),
                preferred_element_type=jnp.float32, precision=precision)
    out_ref[...] = v + b3_ref[0]


def _default_act_dtype(use_bf16):
    if not use_bf16:
        return jnp.float32
    try:
        kind = jax.devices()[0].device_kind.lower()
    except Exception:
        kind = ""
    # Pre-v6 TPUs (v5e/v5p and earlier) have no bf16 VPU/EUP: keep tanh in f32 there.
    if any(g in kind for g in ("v2", "v3", "v4", "v5")):
        return jnp.float32
    return jnp.bfloat16


def prepare_critic_params(params, *, use_bf16=True, act_dtype=None):
    """Hoist per-call weight prep (casts / reshapes / transposes) out of the forward."""
    w1, b1, w2, b2, w3, b3 = params
    mxu_dtype = jnp.bfloat16 if use_bf16 else jnp.float32
    if act_dtype is None:
        act_dtype = _default_act_dtype(use_bf16)
    d0, n1 = w1.shape
    n2 = w2.shape[1]
    return dict(
        w1t=jnp.asarray(w1.T, mxu_dtype),                 # (n1, d0)
        b1=jnp.asarray(b1.reshape(n1, 1), act_dtype),     # column bias (lane broadcast)
        w2t=jnp.asarray(w2.T, mxu_dtype),                 # (n2, n1)
        b2=jnp.asarray(b2.reshape(n2, 1), act_dtype),
        w3=jnp.asarray(w3.reshape(1, n2), mxu_dtype),     # value-head row
        b3=jnp.asarray(b3.reshape(1), jnp.float32),       # SMEM scalar
        mxu_dtype=mxu_dtype, act_dtype=act_dtype,
        d0=d0, n1=n1, n2=n2,
    )


def _select_batch_tile(B, d0, n1, n2, target_tile, vmem_budget):
    """Pick the batch tile: big enough to amortize the ~0.35us/step overhead, small
    enough to fit the VMEM budget, and split so megacore (v7x) has >= 2 tiles."""
    # Rough VMEM bytes per padded batch row: triple-buffered f32 obs tile + f32
    # matmul accumulators + activation copies (conservative).
    per_row = 3 * d0 * 4 + 4 * (n1 + n2) * 4 + 64
    tb_cap = max(128, (vmem_budget // per_row) // 128 * 128)
    tb = min(_round_up(target_tile, 128), tb_cap)
    if B <= tb:
        if B >= 256:
            # Split into two tiles so dimension_semantics=("parallel",) gives both
            # v7x TensorCores work; harmless on single-TC chips.
            tb = _round_up(pl.cdiv(B, 2), 128)
        else:
            tb = _round_up(B, 8)   # single full block; (1, tb) output == full array
    b_pad = _round_up(B, tb)
    return tb, b_pad


def critic_forward(obs, prepped, *, target_tile=8192, vmem_budget=24 << 20):
    """obs: [B, obs_dim] -> value: [B] float32 (== torch.squeeze(net(obs), -1)).

    obs dtype contract: the kernel casts obs to the MXU dtype in-kernel, so if the
    producer can emit bf16 obs, pass it directly (halves the dominant HBM stream).
    Do not add a standalone obs.astype(bf16) before this call.
    """
    B, d0 = obs.shape
    assert d0 == prepped["d0"], (d0, prepped["d0"])
    n1, n2 = prepped["n1"], prepped["n2"]

    tb, b_pad = _select_batch_tile(B, d0, n1, n2, target_tile, vmem_budget)
    if b_pad != B:
        obs = jnp.pad(obs, ((0, b_pad - B), (0, 0)))
    num_tiles = b_pad // tb

    # Obs is the only large HBM stream; once the grid is long enough, give it a
    # third pipeline buffer to smooth DMA latency (per-step compute is small).
    if num_tiles >= 3:
        obs_spec = pl.BlockSpec((tb, d0), lambda i: (i, 0),
                                pipeline_mode=pl.Buffered(3))
    else:
        obs_spec = pl.BlockSpec((tb, d0), lambda i: (i, 0))

    # f32 path is meant to be exact: force HIGHEST precision on the MXU.
    precision = (None if prepped["mxu_dtype"] == jnp.bfloat16
                 else jax.lax.Precision.HIGHEST)

    # Explicit scoped-VMEM limit with headroom (v5e default is 16 MiB; v7x physical
    # VMEM is 64 MiB, so keep the request comfortably under that).
    vmem_est = 3 * tb * d0 * 4 + 4 * tb * (n1 + n2) * 4 + (1 << 20)
    vmem_limit = int(min(max(2 * vmem_est, 32 << 20), 56 << 20))

    out = pl.pallas_call(
        functools.partial(critic_kernel,
                          mxu_dtype=prepped["mxu_dtype"],
                          act_dtype=prepped["act_dtype"],
                          precision=precision),
        out_shape=jax.ShapeDtypeStruct((1, b_pad), jnp.float32),
        grid_spec=pltpu.PrefetchScalarGridSpec(
            num_scalar_prefetch=0,
            grid=(num_tiles,),
            in_specs=[
                obs_spec,                                            # obs tile
                pl.BlockSpec((n1, d0), lambda i: (0, 0)),            # W1^T
                pl.BlockSpec((n1, 1), lambda i: (0, 0)),             # b1 column
                pl.BlockSpec((n2, n1), lambda i: (0, 0)),            # W2^T
                pl.BlockSpec((n2, 1), lambda i: (0, 0)),             # b2 column
                pl.BlockSpec((1, n2), lambda i: (0, 0)),             # W3 row
                pl.BlockSpec(memory_space=pltpu.MemorySpace.SMEM),   # b3 scalar
            ],
            out_specs=pl.BlockSpec((1, tb), lambda i: (0, i)),       # lane-dense values
        ),
        compiler_params=pltpu.CompilerParams(
            dimension_semantics=("parallel",),
            vmem_limit_bytes=vmem_limit,
        ),
    )(obs, prepped["w1t"], prepped["b1"], prepped["w2t"], prepped["b2"],
      prepped["w3"], prepped["b3"])

    # torch.squeeze(..., -1): batch row j of tile i lands at column i*tb + j.
    return out[0, :B]


def init_critic_params(key, obs_dim, hidden_sizes):
    """Deterministic nn.Linear-style init: U(-1/sqrt(fan_in), 1/sqrt(fan_in))."""
    dims = [obs_dim] + list(hidden_sizes) + [1]
    params = []
    for i in range(len(dims) - 1):
        fan_in, fan_out = dims[i], dims[i + 1]
        key, kw, kb = jax.random.split(key, 3)
        bound = 1.0 / (fan_in ** 0.5)
        w = jax.random.uniform(kw, (fan_in, fan_out), jnp.float32, -bound, bound)
        b = jax.random.uniform(kb, (1, fan_out), jnp.float32, -bound, bound)
        params += [w, b]
    return tuple(params)


def critic_reference(obs, params):
    """Pure-JAX f32 reference for correctness checking."""
    w1, b1, w2, b2, w3, b3 = params
    h1 = jnp.tanh(obs @ w1 + b1)
    h2 = jnp.tanh(h1 @ w2 + b2)
    v = h2 @ w3 + b3
    return jnp.squeeze(v, -1)


if __name__ == "__main__":
    key = jax.random.PRNGKey(0)
    obs_dim = 32
    hidden_sizes = (64, 64)

    kp, kx1, kx2, kx3 = jax.random.split(key, 4)
    params = init_critic_params(kp, obs_dim, hidden_sizes)

    # Weight prep hoisted out of the forward (done once, reused across calls).
    prepped_bf16 = prepare_critic_params(params, use_bf16=True)
    prepped_f32 = prepare_critic_params(params, use_bf16=False)

    # Case 1: small ragged batch -> single full-block grid.
    B1 = 50
    obs1 = jax.random.normal(kx1, (B1, obs_dim), jnp.float32)
    ref1 = critic_reference(obs1, params)

    v1_f32 = jax.block_until_ready(critic_forward(obs1, prepped_f32))
    assert v1_f32.shape == (B1,), v1_f32.shape
    assert jnp.allclose(v1_f32, ref1, atol=1e-5, rtol=1e-5), (v1_f32, ref1)

    v1_bf16 = jax.block_until_ready(critic_forward(obs1, prepped_bf16))
    assert v1_bf16.shape == (B1,), v1_bf16.shape
    assert jnp.allclose(v1_bf16, ref1, atol=5e-2, rtol=5e-2), (v1_bf16, ref1)

    # Case 2: mid-size ragged batch -> split into 2 tiles (megacore gets work on v7x).
    B2 = 300
    obs2 = jax.random.normal(kx2, (B2, obs_dim), jnp.float32)
    ref2 = critic_reference(obs2, params)
    v2 = jax.block_until_ready(critic_forward(obs2, prepped_bf16))
    assert v2.shape == (B2,), v2.shape
    assert jnp.allclose(v2, ref2, atol=5e-2, rtol=5e-2), (v2, ref2)

    # Case 3: multi-tile grid (target_tile forced small so the >=3-tile / Buffered(3)
    # path is exercised at small shapes; production default is target_tile=8192).
    B3 = 1000
    obs3 = jax.random.normal(kx3, (B3, obs_dim), jnp.float32)
    ref3 = critic_reference(obs3, params)
    v3 = jax.block_until_ready(critic_forward(obs3, prepped_bf16, target_tile=256))
    assert v3.shape == (B3,), v3.shape
    assert jnp.allclose(v3, ref3, atol=5e-2, rtol=5e-2), (v3, ref3)

    print("KERNEL_OK")
</pallas_src>

<mosaic_0001>
module attributes {stable_mosaic.version = 11 : i64} {
  func.func @critic_kernel(%arg0: i32, %arg1: memref<56x32xf32, #tpu.memory_space<vmem>>, %arg2: memref<64x32xf32, #tpu.memory_space<vmem>>, %arg3: memref<64x1xf32, #tpu.memory_space<vmem>>, %arg4: memref<64x64xf32, #tpu.memory_space<vmem>>, %arg5: memref<64x1xf32, #tpu.memory_space<vmem>>, %arg6: memref<1x64xf32, #tpu.memory_space<vmem>>, %arg7: memref<1xf32, #tpu.memory_space<smem>>, %arg8: memref<1x56xf32, #tpu.memory_space<vmem>>) attributes {dimension_semantics = [#tpu.dimension_semantics<parallel>], iteration_bounds = array<i64: 1>, scalar_prefetch = 0 : i64, scratch_operands = 0 : i64, tpu.core_type = #tpu.core_type<tc>, window_params = [{transform_indices = @transform_0, window_bounds = array<i64: 56, 32>}, {pipeline_mode = #tpu.pipeline_mode<synchronous>, transform_indices = @transform_1, window_bounds = array<i64: 64, 32>}, {pipeline_mode = #tpu.pipeline_mode<synchronous>, transform_indices = @transform_2, window_bounds = array<i64: 64, 1>}, {pipeline_mode = #tpu.pipeline_mode<synchronous>, transform_indices = @transform_3, window_bounds = array<i64: 64, 64>}, {pipeline_mode = #tpu.pipeline_mode<synchronous>, transform_indices = @transform_4, window_bounds = array<i64: 64, 1>}, {pipeline_mode = #tpu.pipeline_mode<synchronous>, transform_indices = @transform_5, window_bounds = array<i64: 1, 64>}, {transform_indices = @transform_6, window_bounds = array<i64: 1>}, {transform_indices = @transform_7, window_bounds = array<i64: 1, 56>}]} {
    %c0 = arith.constant 0 : index
    %c0_0 = arith.constant 0 : index
    %0 = vector.load %arg1[%c0, %c0_0] : memref<56x32xf32, #tpu.memory_space<vmem>>, vector<56x32xf32>
    %1 = tpu.transpose %0, [1, 0] : vector<56x32xf32> -> vector<32x56xf32>
    %c0_1 = arith.constant 0 : index
    %c0_2 = arith.constant 0 : index
    %2 = vector.load %arg2[%c0_1, %c0_2] : memref<64x32xf32, #tpu.memory_space<vmem>>, vector<64x32xf32>
    %cst = arith.constant dense<0.000000e+00> : vector<64x56xf32>
    %3 = tpu.matmul %2, %1, %cst {dimension_numbers = #tpu.dot_dimension_numbers<[1], [0], [0], [1], [0, 0, 1, 1], [], []>, precision = #tpu.contract_precision<fp32>} : vector<64x32xf32>, vector<32x56xf32>, vector<64x56xf32> -> vector<64x56xf32>
    %c0_3 = arith.constant 0 : index
    %c0_4 = arith.constant 0 : index
    %4 = vector.load %arg3[%c0_3, %c0_4] : memref<64x1xf32, #tpu.memory_space<vmem>>, vector<64x1xf32>
    %5 = vector.broadcast %4 : vector<64x1xf32> to vector<64x56xf32>
    %6 = arith.addf %3, %5 : vector<64x56xf32>
    %7 = math.tanh %6 : vector<64x56xf32>
    %c0_5 = arith.constant 0 : index
    %c0_6 = arith.constant 0 : index
    %8 = vector.load %arg4[%c0_5, %c0_6] : memref<64x64xf32, #tpu.memory_space<vmem>>, vector<64x64xf32>
    %cst_7 = arith.constant dense<0.000000e+00> : vector<64x56xf32>
    %9 = tpu.matmul %8, %7, %cst_7 {dimension_numbers = #tpu.dot_dimension_numbers<[1], [0], [0], [1], [0, 0, 1, 1], [], []>, precision = #tpu.contract_precision<fp32>} : vector<64x64xf32>, vector<64x56xf32>, vector<64x56xf32> -> vector<64x56xf32>
    %c0_8 = arith.constant 0 : index
    %c0_9 = arith.constant 0 : index
    %10 = vector.load %arg5[%c0_8, %c0_9] : memref<64x1xf32, #tpu.memory_space<vmem>>, vector<64x1xf32>
    %11 = vector.broadcast %10 : vector<64x1xf32> to vector<64x56xf32>
    %12 = arith.addf %9, %11 : vector<64x56xf32>
    %13 = math.tanh %12 : vector<64x56xf32>
    %c0_10 = arith.constant 0 : index
    %c0_11 = arith.constant 0 : index
    %14 = vector.load %arg6[%c0_10, %c0_11] : memref<1x64xf32, #tpu.memory_space<vmem>>, vector<1x64xf32>
    %cst_12 = arith.constant dense<0.000000e+00> : vector<1x56xf32>
    %15 = tpu.matmul %14, %13, %cst_12 {dimension_numbers = #tpu.dot_dimension_numbers<[1], [0], [0], [1], [0, 0, 1, 1], [], []>, precision = #tpu.contract_precision<fp32>} : vector<1x64xf32>, vector<64x56xf32>, vector<1x56xf32> -> vector<1x56xf32>
    %c0_13 = arith.constant 0 : index
    %16 = memref.load %arg7[%c0_13] : memref<1xf32, #tpu.memory_space<smem>>
    %17 = vector.broadcast %16 : f32 to vector<1x56xf32>
    %18 = arith.addf %15, %17 : vector<1x56xf32>
    %c0_14 = arith.constant 0 : index
    %c0_15 = arith.constant 0 : index
    %19 = vector.load %arg8[%c0_14, %c0_15] : memref<1x56xf32, #tpu.memory_space<vmem>>, vector<1x56xf32>
    tpu.vector_store %arg8[%c0_14, %c0_15], %18 {strides = array<i32>} : memref<1x56xf32, #tpu.memory_space<vmem>>, vector<1x56xf32>,
    return
  }
  func.func @transform_0(%arg0: i32) -> (i32, i32) {
    %c0_i32 = arith.constant 0 : i32
    %c0_i32_0 = arith.constant 0 : i32
    return %arg0, %c0_i32 : i32, i32
  }
  func.func @transform_1(%arg0: i32) -> (i32, i32) {
    %c0_i32 = arith.constant 0 : i32
    %c0_i32_0 = arith.constant 0 : i32
    %c0_i32_1 = arith.constant 0 : i32
    return %c0_i32, %c0_i32_0 : i32, i32
  }
  func.func @transform_2(%arg0: i32) -> (i32, i32) {
    %c0_i32 = arith.constant 0 : i32
    %c0_i32_0 = arith.constant 0 : i32
    %c0_i32_1 = arith.constant 0 : i32
    return %c0_i32, %c0_i32_0 : i32, i32
  }
  func.func @transform_3(%arg0: i32) -> (i32, i32) {
    %c0_i32 = arith.constant 0 : i32
    %c0_i32_0 = arith.constant 0 : i32
    %c0_i32_1 = arith.constant 0 : i32
    return %c0_i32, %c0_i32_0 : i32, i32
  }
  func.func @transform_4(%arg0: i32) -> (i32, i32) {
    %c0_i32 = arith.constant 0 : i32
    %c0_i32_0 = arith.constant 0 : i32
    %c0_i32_1 = arith.constant 0 : i32
    return %c0_i32, %c0_i32_0 : i32, i32
  }
  func.func @transform_5(%arg0: i32) -> (i32, i32) {
    %c0_i32 = arith.constant 0 : i32
    %c0_i32_0 = arith.constant 0 : i32
    %c0_i32_1 = arith.constant 0 : i32
    return %c0_i32, %c0_i32_0 : i32, i32
  }
  func.func @transform_6(%arg0: i32) -> i32 {
    %c0_i32 = arith.constant 0 : i32
    %c0_i32_0 = arith.constant 0 : i32
    return %c0_i32 : i32
  }
  func.func @transform_7(%arg0: i32) -> (i32, i32) {
    %c0_i32 = arith.constant 0 : i32
    %c0_i32_0 = arith.constant 0 : i32
    return %c0_i32, %arg0 : i32, i32
  }
}

</mosaic_0001>

<llo_original>
// kernel: tpu_custom_call.1
$region0: #{tpu_custom_call.1}
  #allocation0 [shape = 'u32[]', space=smem, size = 0x4, offset = 0x4, fixed_abs, tag = 'smem constant byte address 0x4 - core index']
  #allocation1 [shape = 'u32[144,128]{1,0:T(1,128)}', space=vmem, size = 0x12000, scoped, tag = 'internal scratch']
  #allocation2 [shape = 'f32[1]{0:T(128)S(6)}', space=smem, size = 0x200, scoped, tag = 'scoped memory for tpu_custom_call.1']
  %s0 = inlined_call_operand.vmem [shape: f32[56,32], index: 0, kind: input, shape index: {}]
  %s1 = inlined_call_operand.vmem [shape: f32[64,32], index: 1, kind: input, shape index: {}]
  %s2 = inlined_call_operand.vmem [shape: f32[64,1], index: 2, kind: input, shape index: {}]
  %s3 = inlined_call_operand.vmem [shape: f32[64,64], index: 3, kind: input, shape index: {}]
  %s4 = inlined_call_operand.vmem [shape: f32[64,1], index: 4, kind: input, shape index: {}]
  %s5 = inlined_call_operand.vmem [shape: f32[1,64], index: 5, kind: input, shape index: {}]
  %s6 = inlined_call_operand.<no memory space> [shape: f32[1], index: 6, kind: input, shape index: {}]
  %s7 = inlined_call_operand.hbm [shape: f32[1,56], index: 7, kind: output, shape index: {}]
  %s8 = sld [smem:[#allocation0]]
  $region38: #{tpu_custom_call.1} parent=0
    _
  %s10 = ssub.s32 1, %s8
  %s11 = scalar_select 0, %s10, %s8
  %12 = sst [smem:[#allocation2]] %s6
  $region1: #{tpu_custom_call.1} parent=0
    #allocation3 [shape = 'u8[512]{0}', space=vmem, size = 0x400, scoped, tag = 'output window, operand 0, single buffered']
    #allocation4 [shape = 's32[1]{0}', space=sflag, size = 0x4, scoped, tag = 'scoped memory for tpu_custom_call.1']
    %13 = vsyncpa [#allocation4], 0
    // Predicated region
    $region2: #{tpu_custom_call.1} parent=1 // pred_check
      _
    $region3: #{tpu_custom_call.1} parent=1 // pred_check_branch
      %15 = sbr.rel (0) target = $region5
    $region4: #{tpu_custom_call.1} parent=1 // pred_region
      _
    $region5: #{tpu_custom_call.1} parent=1 // pred_fallthru
      _
    // Predicated region
    $region6: #{tpu_custom_call.1} parent=1 // pred_check
      _
    $region7: #{tpu_custom_call.1} parent=1 // pred_check_branch
      %17 = sbr.rel (0) target = $region9
    $region8: #{tpu_custom_call.1} parent=1 // pred_region
      _
    $region9: #{tpu_custom_call.1} parent=1 // pred_fallthru
      _
    // Predicated region
    $region10: #{tpu_custom_call.1} parent=1 // pred_check
      _
    $region11: #{tpu_custom_call.1} parent=1 // pred_check_branch
      %19 = sbr.rel (0) target = $region13
    $region12: #{tpu_custom_call.1} parent=1 // pred_region
      _
    $region13: #{tpu_custom_call.1} parent=1 // pred_fallthru
      _
    // Predicated region
    $region14: #{tpu_custom_call.1} parent=1 // pred_check
      _
    $region15: #{tpu_custom_call.1} parent=1 // pred_check_branch
      %21 = sbr.rel (0) target = $region17
    $region16: #{tpu_custom_call.1} parent=1 // pred_region
      _
    $region17: #{tpu_custom_call.1} parent=1 // pred_fallthru
      _
    // Predicated region
    $region18: #{tpu_custom_call.1} parent=1 // pred_check
      _
    $region19: #{tpu_custom_call.1} parent=1 // pred_check_branch
      %23 = sbr.rel (0) target = $region21
    $region20: #{tpu_custom_call.1} parent=1 // pred_region
      _
    $region21: #{tpu_custom_call.1} parent=1 // pred_fallthru
      _
    // Predicated region
    $region22: #{tpu_custom_call.1} parent=1 // pred_check
      _
    $region23: #{tpu_custom_call.1} parent=1 // pred_check_branch
      %25 = sbr.rel (0) target = $region25
    $region24: #{tpu_custom_call.1} parent=1 // pred_region
      _
    $region25: #{tpu_custom_call.1} parent=1 // pred_fallthru
      _
    // Predicated region
    $region26: #{tpu_custom_call.1} parent=1 // pred_check
      _
    $region27: #{tpu_custom_call.1} parent=1 // pred_check_branch
      %27 = sbr.rel (0) target = $region29
    $region28: #{tpu_custom_call.1} parent=1 // pred_region
      _
    $region29: #{tpu_custom_call.1} parent=1 // pred_fallthru
      _
    %v28 = vld [vmem:[%s0] sm:$0xff]
    %v29 = vld [vmem:[%s0 + $0x8] sm:$0xff]
    %v30 = vld [vmem:[%s0 + $0x10] sm:$0xff]
    %v31 = vld [vmem:[%s0 + $0x18] sm:$0xff]
    %v32 = vld [vmem:[%s0 + $0x20] sm:$0xff]
    %v33 = vld [vmem:[%s0 + $0x28] sm:$0xff]
    %v34 = vld [vmem:[%s0 + $0x30] sm:$0xff]
    %v35 = vld [vmem:[%s1] sm:$0xff]
    %v36 = vld [vmem:[%s1 + $0x8] sm:$0xff]
    %v37 = vld [vmem:[%s1 + $0x10] sm:$0xff]
    %v38 = vld [vmem:[%s1 + $0x18] sm:$0xff]
    %v39 = vld [vmem:[%s1 + $0x20] sm:$0xff]
    %v40 = vld [vmem:[%s1 + $0x28] sm:$0xff]
    %v41 = vld [vmem:[%s1 + $0x30] sm:$0xff]
    %v42 = vld [vmem:[%s1 + $0x38] sm:$0xff]
    %v43 = vld [vmem:[%s2] sm:$0xff]
    %v44 = vld [vmem:[%s2 + $0x8] sm:$0xff]
    %v45 = vld [vmem:[%s2 + $0x10] sm:$0xff]
    %v46 = vld [vmem:[%s2 + $0x18] sm:$0xff]
    %v47 = vld [vmem:[%s2 + $0x20] sm:$0xff]
    %v48 = vld [vmem:[%s2 + $0x28] sm:$0xff]
    %v49 = vld [vmem:[%s2 + $0x30] sm:$0xff]
    %v50 = vld [vmem:[%s2 + $0x38] sm:$0xff]
    %52 = vset.pattern.permute.xlu0 0
    %53 = vperm.xlu0 %52, %v43
    %v54 = vpop.permute.xlu0 %53
    %57 = vset.pattern.permute.xlu0 0
    %58 = vperm.xlu0 %57, %v44
    %v59 = vpop.permute.xlu0 %58
    %62 = vset.pattern.permute.xlu0 0
    %63 = vperm.xlu0 %62, %v45
    %v64 = vpop.permute.xlu0 %63
    %67 = vset.pattern.permute.xlu0 0
    %68 = vperm.xlu0 %67, %v46
    %v69 = vpop.permute.xlu0 %68
    %72 = vset.pattern.permute.xlu0 0
    %73 = vperm.xlu0 %72, %v47
    %v74 = vpop.permute.xlu0 %73
    %77 = vset.pattern.permute.xlu0 0
    %78 = vperm.xlu0 %77, %v48
    %v79 = vpop.permute.xlu0 %78
    %82 = vset.pattern.permute.xlu0 0
    %83 = vperm.xlu0 %82, %v49
    %v84 = vpop.permute.xlu0 %83
    %87 = vset.pattern.permute.xlu0 0
    %88 = vperm.xlu0 %87, %v50
    %v89 = vpop.permute.xlu0 %88
    %vm91 = vcmask 261120
    %v93 = vsel %vm91, %v35, 0
    %v96 = vsel %vm91, %v36, 0
    %v99 = vsel %vm91, %v37, 0
    %v102 = vsel %vm91, %v38, 0
    %v105 = vsel %vm91, %v39, 0
    %v108 = vsel %vm91, %v40, 0
    %v111 = vsel %vm91, %v41, 0
    %v114 = vsel %vm91, %v42, 0
    %v117 = vsel %vm91, %v28, 0
    %v120 = vsel %vm91, %v29, 0
    %v123 = vsel %vm91, %v30, 0
    %v126 = vsel %vm91, %v31, 0
    %v129 = vsel %vm91, %v32, 0
    %v132 = vsel %vm91, %v33, 0
    %v135 = vsel %vm91, %v34, 0
    %137 = vmatprep.subr.mxu0 0.0
    %v138 = vand.u32 %v117, 4294901760
    %139 = vmatpush1.xpose.msra.mxu0 %v138
    %140 = vmatprep.subr.mxu0 0.0
    %v141 = vand.u32 %v120, 4294901760
    %142 = vmatpush1.xpose.msra.mxu0 %v141
    %143 = vmatprep.subr.mxu0 0.0
    %v144 = vand.u32 %v123, 4294901760
    %145 = vmatpush1.xpose.msra.mxu0 %v144
    %146 = vmatprep.subr.mxu0 0.0
    %v147 = vand.u32 %v126, 4294901760
    %148 = vmatpush1.xpose.msra.mxu0 %v147
    %149 = vmatprep.subr.mxu0 0.0
    %v150 = vand.u32 %v129, 4294901760
    %151 = vmatpush1.xpose.msra.mxu0 %v150
    %152 = vmatprep.subr.mxu0 0.0
    %v153 = vand.u32 %v132, 4294901760
    %154 = vmatpush1.xpose.msra.mxu0 %v153
    %155 = vmatprep.subr.mxu0 0.0
    %v156 = vand.u32 %v135, 4294901760
    %157 = vmatpush1.xpose.msra.mxu0 %v156
    %158 = vmatprep.subr.mxu0 0.0
    %159 = vmatpush1.xpose.msra.mxu0 0.0
    %160 = vmatprep.subr.mxu0 0.0
    %161 = vmatpush1.xpose.msra.mxu0 0.0
    %162 = vmatprep.subr.mxu0 0.0
    %163 = vmatpush1.xpose.msra.mxu0 0.0
    %164 = vmatprep.subr.mxu0 0.0
    %165 = vmatpush1.xpose.msra.mxu0 0.0
    %166 = vmatprep.subr.mxu0 0.0
    %167 = vmatpush1.xpose.msra.mxu0 0.0
    %168 = vmatprep.subr.mxu0 0.0
    %169 = vmatpush1.xpose.msra.mxu0 0.0
    %170 = vmatprep.subr.mxu0 0.0
    %171 = vmatpush1.xpose.msra.mxu0 0.0
    %172 = vmatprep.subr.mxu0 0.0
    %173 = vmatpush1.xpose.msra.mxu0 0.0
    %174 = vmatprep.subr.mxu0 0.0
    %175 = vmatpush1.xpose.msra.mxu0 0.0
    %176 = vmatprep.subr.mxu0 0.0
    %177 = vmatpush1.xpose.msra.mxu0 0.0
    %178 = vmatprep.subr.mxu0 0.0
    %179 = vmatpush1.xpose.msra.mxu0 0.0
    %180 = vmatprep.subr.mxu0 0.0
    %181 = vmatpush1.xpose.msra.mxu0 0.0
    %182 = vmatprep.subr.mxu0 0.0
    %183 = vmatpush1.xpose.msra.mxu0 0.0
    %184 = vmatprep.subr.mxu0 0.0
    %185 = vmatpush1.xpose.msra.mxu0 0.0
    %186 = vmatprep.subr.mxu0 0.0
    %187 = vmatpush1.xpose.msra.mxu0 0.0
    %188 = vmatprep.subr.mxu0 0.0
    %189 = vmatpush1.xpose.msra.mxu0 0.0
    %190 = vmatprep.subr.mxu0 0.0
    %191 = vmatpush1.xpose.msra.mxu0 0.0
    %192 = vmatprep.subr.mxu0 0.0
    %193 = vmatpush1.xpose.msra.mxu0 0.0
    %194 = vmatprep.subr.mxu0 0.0
    %195 = vmatpush1.xpose.msra.mxu0 0.0
    %196 = vmatprep.subr.mxu0 0.0
    %197 = vmatpush1.xpose.msra.mxu0 0.0
    %198 = vmatprep.subr.mxu0 0.0
    %199 = vmatpush1.xpose.msra.mxu0 0.0
    %200 = vmatprep.subr.mxu0 0.0
    %201 = vmatpush1.xpose.msra.mxu0 0.0
    %202 = vmatprep.subr.mxu0 0.0
    %203 = vmatpush1.xpose.msra.mxu0 0.0
    %204 = vmatprep.subr.mxu0 0.0
    %205 = vmatpush1.xpose.msra.mxu0 0.0
    %206 = vmatprep.subr.mxu0 0.0
    %207 = vmatpush1.xpose.msra.mxu0 0.0
    %208 = vmatprep.mubr.f32.mxu0 0.0
    %v209 = vand.u32 %v93, 4294901760
    %v210 = vsub.f32 %v93, %v209
    %v211 = vand.u32 %v210, 4294901760
    %v212 = vsub.f32 %v210, %v211
    %v213 = vand.u32 %v212, 4294901760
    %214 = vmatmul.mubr.f32.gmra.mrb[0].mxu0 %v213
    %v215 = vpop.f32.mrb[0].mxu0
    %v216 = vadd.f32 %v54, %v215
    %v217 = vpop.f32.mrb[0].mxu0
    %218 = vmatprep.mubr.f32.mxu0 0.0
    %v219 = vand.u32 %v96, 4294901760
    %v220 = vsub.f32 %v96, %v219
    %v221 = vand.u32 %v220, 4294901760
    %v222 = vsub.f32 %v220, %v221
    %v223 = vand.u32 %v222, 4294901760
    %224 = vmatmul.mubr.f32.gmra.mrb[0].mxu0 %v223
    %v225 = vpop.f32.mrb[0].mxu0
    %v226 = vadd.f32 %v59, %v225
    %v227 = vpop.f32.mrb[0].mxu0
    %228 = vmatprep.mubr.f32.mxu0 0.0
    %v229 = vand.u32 %v99, 4294901760
    %v230 = vsub.f32 %v99, %v229
    %v231 = vand.u32 %v230, 4294901760
    %v232 = vsub.f32 %v230, %v231
    %v233 = vand.u32 %v232, 4294901760
    %234 = vmatmul.mubr.f32.gmra.mrb[0].mxu0 %v233
    %v235 = vpop.f32.mrb[0].mxu0
    %v236 = vadd.f32 %v64, %v235
    %v237 = vpop.f32.mrb[0].mxu0
    %238 = vmatprep.mubr.f32.mxu0 0.0
    %v239 = vand.u32 %v102, 4294901760
    %v240 = vsub.f32 %v102, %v239
    %v241 = vand.u32 %v240, 4294901760
    %v242 = vsub.f32 %v240, %v241
    %v243 = vand.u32 %v242, 4294901760
    %244 = vmatmul.mubr.f32.gmra.mrb[0].mxu0 %v243
    %v245 = vpop.f32.mrb[0].mxu0
    %v246 = vadd.f32 %v69, %v245
    %v247 = vpop.f32.mrb[0].mxu0
    %248 = vmatprep.mubr.f32.mxu0 0.0
    %v249 = vand.u32 %v105, 4294901760
    %v250 = vsub.f32 %v105, %v249
    %v251 = vand.u32 %v250, 4294901760
    %v252 = vsub.f32 %v250, %v251
    %v253 = vand.u32 %v252, 4294901760
    %254 = vmatmul.mubr.f32.gmra.mrb[0].mxu0 %v253
    %v255 = vpop.f32.mrb[0].mxu0
    %v256 = vadd.f32 %v74, %v255
    %v257 = vpop.f32.mrb[0].mxu0
    %258 = vmatprep.mubr.f32.mxu0 0.0
    %v259 = vand.u32 %v108, 4294901760
    %v260 = vsub.f32 %v108, %v259
    %v261 = vand.u32 %v260, 4294901760
    %v262 = vsub.f32 %v260, %v261
    %v263 = vand.u32 %v262, 4294901760
    %264 = vmatmul.mubr.f32.gmra.mrb[0].mxu0 %v263
    %v265 = vpop.f32.mrb[0].mxu0
    %v266 = vadd.f32 %v79, %v265
    %v267 = vpop.f32.mrb[0].mxu0
    %268 = vmatprep.mubr.f32.mxu0 0.0
    %v269 = vand.u32 %v111, 4294901760
    %v270 = vsub.f32 %v111, %v269
    %v271 = vand.u32 %v270, 4294901760
    %v272 = vsub.f32 %v270, %v271
    %v273 = vand.u32 %v272, 4294901760
    %274 = vmatmul.mubr.f32.gmra.mrb[0].mxu0 %v273
    %v275 = vpop.f32.mrb[0].mxu0
    %v276 = vadd.f32 %v84, %v275
    %v277 = vpop.f32.mrb[0].mxu0
    %278 = vmatprep.mubr.f32.mxu0 0.0
    %v279 = vand.u32 %v114, 4294901760
    %v280 = vsub.f32 %v114, %v279
    %v281 = vand.u32 %v280, 4294901760
    %v282 = vsub.f32 %v280, %v281
    %v283 = vand.u32 %v282, 4294901760
    %284 = vmatmul.mubr.f32.gmra.mrb[0].mxu0 %v283
    %v285 = vpop.f32.mrb[0].mxu0
    %v286 = vadd.f32 %v89, %v285
    %v287 = vpop.f32.mrb[0].mxu0
    %288 = vdwg.mxu0
    %289 = vmatprep.subr.mxu0 0.0
    %v290 = vand.u32 %v117, 4294901760
    %v291 = vsub.f32 %v117, %v290
    %v292 = vand.u32 %v291, 4294901760
    %v293 = vsub.f32 %v291, %v292
    %v294 = vand.u32 %v293, 4294901760
    %295 = vmatpush1.xpose.msra.mxu0 %v294
    %296 = vmatprep.subr.mxu0 0.0
    %v297 = vand.u32 %v120, 4294901760
    %v298 = vsub.f32 %v120, %v297
    %v299 = vand.u32 %v298, 4294901760
    %v300 = vsub.f32 %v298, %v299
    %v301 = vand.u32 %v300, 4294901760
    %302 = vmatpush1.xpose.msra.mxu0 %v301
    %303 = vmatprep.subr.mxu0 0.0
    %v304 = vand.u32 %v123, 4294901760
    %v305 = vsub.f32 %v123, %v304
    %v306 = vand.u32 %v305, 4294901760
    %v307 = vsub.f32 %v305, %v306
    %v308 = vand.u32 %v307, 4294901760
    %309 = vmatpush1.xpose.msra.mxu0 %v308
    %310 = vmatprep.subr.mxu0 0.0
    %v311 = vand.u32 %v126, 4294901760
    %v312 = vsub.f32 %v126, %v311
    %v313 = vand.u32 %v312, 4294901760
    %v314 = vsub.f32 %v312, %v313
    %v315 = vand.u32 %v314, 4294901760
    %316 = vmatpush1.xpose.msra.mxu0 %v315
    %317 = vmatprep.subr.mxu0 0.0
    %v318 = vand.u32 %v129, 4294901760
    %v319 = vsub.f32 %v129, %v318
    %v320 = vand.u32 %v319, 4294901760
    %v321 = vsub.f32 %v319, %v320
    %v322 = vand.u32 %v321, 4294901760
    %323 = vmatpush1.xpose.msra.mxu0 %v322
    %324 = vmatprep.subr.mxu0 0.0
    %v325 = vand.u32 %v132, 4294901760
    %v326 = vsub.f32 %v132, %v325
    %v327 = vand.u32 %v326, 4294901760
    %v328 = vsub.f32 %v326, %v327
    %v329 = vand.u32 %v328, 4294901760
    %330 = vmatpush1.xpose.msra.mxu0 %v329
    %331 = vmatprep.subr.mxu0 0.0
    %v332 = vand.u32 %v135, 4294901760
    %v333 = vsub.f32 %v135, %v332
    %v334 = vand.u32 %v333, 4294901760
    %v335 = vsub.f32 %v333, %v334
    %v336 = vand.u32 %v335, 4294901760
    %337 = vmatpush1.xpose.msra.mxu0 %v336
    %338 = vmatprep.subr.mxu0 0.0
    %339 = vmatpush1.xpose.msra.mxu0 0.0
    %340 = vmatprep.subr.mxu0 0.0
    %341 = vmatpush1.xpose.msra.mxu0 0.0
    %342 = vmatprep.subr.mxu0 0.0
    %343 = vmatpush1.xpose.msra.mxu0 0.0
    %344 = vmatprep.subr.mxu0 0.0
    %345 = vmatpush1.xpose.msra.mxu0 0.0
    %346 = vmatprep.subr.mxu0 0.0
    %347 = vmatpush1.xpose.msra.mxu0 0.0
    %348 = vmatprep.subr.mxu0 0.0
    %349 = vmatpush1.xpose.msra.mxu0 0.0
    %350 = vmatprep.subr.mxu0 0.0
    %351 = vmatpush1.xpose.msra.mxu0 0.0
    %352 = vmatprep.subr.mxu0 0.0
    %353 = vmatpush1.xpose.msra.mxu0 0.0
    %354 = vmatprep.subr.mxu0 0.0
    %355 = vmatpush1.xpose.msra.mxu0 0.0
    %356 = vmatprep.subr.mxu0 0.0
    %357 = vmatpush1.xpose.msra.mxu0 0.0
    %358 = vmatprep.subr.mxu0 0.0
    %359 = vmatpush1.xpose.msra.mxu0 0.0
    %360 = vmatprep.subr.mxu0 0.0
    %361 = vmatpush1.xpose.msra.mxu0 0.0
    %362 = vmatprep.subr.mxu0 0.0
    %363 = vmatpush1.xpose.msra.mxu0 0.0
    %364 = vmatprep.subr.mxu0 0.0
    %365 = vmatpush1.xpose.msra.mxu0 0.0
    %366 = vmatprep.subr.mxu0 0.0
    %367 = vmatpush1.xpose.msra.mxu0 0.0
    %368 = vmatprep.subr.mxu0 0.0
    %369 = vmatpush1.xpose.msra.mxu0 0.0
    %370 = vmatprep.subr.mxu0 0.0
    %371 = vmatpush1.xpose.msra.mxu0 0.0
    %372 = vmatprep.subr.mxu0 0.0
    %373 = vmatpush1.xpose.msra.mxu0 0.0
    %374 = vmatprep.subr.mxu0 0.0
    %375 = vmatpush1.xpose.msra.mxu0 0.0
    %376 = vmatprep.subr.mxu0 0.0
    %377 = vmatpush1.xpose.msra.mxu0 0.0
    %378 = vmatprep.subr.mxu0 0.0
    %379 = vmatpush1.xpose.msra.mxu0 0.0
    %380 = vmatprep.subr.mxu0 0.0
    %381 = vmatpush1.xpose.msra.mxu0 0.0
    %382 = vmatprep.subr.mxu0 0.0
    %383 = vmatpush1.xpose.msra.mxu0 0.0
    %384 = vmatprep.subr.mxu0 0.0
    %385 = vmatpush1.xpose.msra.mxu0 0.0
    %386 = vmatprep.subr.mxu0 0.0
    %387 = vmatpush1.xpose.msra.mxu0 0.0
    %388 = vmatprep.mubr.f32.mxu0 0.0
    %v389 = vand.u32 %v93, 4294901760
    %390 = vmatmul.mubr.f32.gmra.mrb[0].mxu0 %v389
    %v391 = vpop.f32.mrb[0].mxu0
    %v392 = vadd.f32 %v216, %v391
    %v393 = vpop.f32.mrb[0].mxu0
    %394 = vmatprep.mubr.f32.mxu0 0.0
    %v395 = vand.u32 %v96, 4294901760
    %396 = vmatmul.mubr.f32.gmra.mrb[0].mxu0 %v395
    %v397 = vpop.f32.mrb[0].mxu0
    %v398 = vadd.f32 %v226, %v397
    %v399 = vpop.f32.mrb[0].mxu0
    %400 = vmatprep.mubr.f32.mxu0 0.0
    %v401 = vand.u32 %v99, 4294901760
    %402 = vmatmul.mubr.f32.gmra.mrb[0].mxu0 %v401
    %v403 = vpop.f32.mrb[0].mxu0
    %v404 = vadd.f32 %v236, %v403
    %v405 = vpop.f32.mrb[0].mxu0
    %406 = vmatprep.mubr.f32.mxu0 0.0
    %v407 = vand.u32 %v102, 4294901760
    %408 = vmatmul.mubr.f32.gmra.mrb[0].mxu0 %v407
    %v409 = vpop.f32.mrb[0].mxu0
    %v410 = vadd.f32 %v246, %v409
    %v411 = vpop.f32.mrb[0].mxu0
    %412 = vmatprep.mubr.f32.mxu0 0.0
    %v413 = vand.u32 %v105, 4294901760
    %414 = vmatmul.mubr.f32.gmra.mrb[0].mxu0 %v413
    %v415 = vpop.f32.mrb[0].mxu0
    %v416 = vadd.f32 %v256, %v415
    %v417 = vpop.f32.mrb[0].mxu0
    %418 = vmatprep.mubr.f32.mxu0 0.0
    %v419 = vand.u32 %v108, 4294901760
    %420 = vmatmul.mubr.f32.gmra.mrb[0].mxu0 %v419
    %v421 = vpop.f32.mrb[0].mxu0
    %v422 = vadd.f32 %v266, %v421
    %v423 = vpop.f32.mrb[0].mxu0
    %424 = vmatprep.mubr.f32.mxu0 0.0
    %v425 = vand.u32 %v111, 4294901760
    %426 = vmatmul.mubr.f32.gmra.mrb[0].mxu0 %v425
    %v427 = vpop.f32.mrb[0].mxu0
    %v428 = vadd.f32 %v276, %v427
    %v429 = vpop.f32.mrb[0].mxu0
    %430 = vmatprep.mubr.f32.mxu0 0.0
    %v431 = vand.u32 %v114, 4294901760
    %432 = vmatmul.mubr.f32.gmra.mrb[0].mxu0 %v431
    %v433 = vpop.f32.mrb[0].mxu0
    %v434 = vadd.f32 %v286, %v433
    %v435 = vpop.f32.mrb[0].mxu0
    %436 = vdwg.mxu0
    %437 = vmatprep.subr.mxu0 0.0
    %v438 = vand.u32 %v117, 4294901760
    %v439 = vsub.f32 %v117, %v438
    %440 = vmatpush1.xpose.msra.mxu0 %v439
    %441 = vmatprep.subr.mxu0 0.0
    %v442 = vand.u32 %v120, 4294901760
    %v443 = vsub.f32 %v120, %v442
    %444 = vmatpush1.xpose.msra.mxu0 %v443
    %445 = vmatprep.subr.mxu0 0.0
    %v446 = vand.u32 %v123, 4294901760
    %v447 = vsub.f32 %v123, %v446
    %448 = vmatpush1.xpose.msra.mxu0 %v447
    %449 = vmatprep.subr.mxu0 0.0
    %v450 = vand.u32 %v126, 4294901760
    %v451 = vsub.f32 %v126, %v450
    %452 = vmatpush1.xpose.msra.mxu0 %v451
    %453 = vmatprep.subr.mxu0 0.0
    %v454 = vand.u32 %v129, 4294901760
    %v455 = vsub.f32 %v129, %v454
    %456 = vmatpush1.xpose.msra.mxu0 %v455
    %457 = vmatprep.subr.mxu0 0.0
    %v458 = vand.u32 %v132, 4294901760
    %v459 = vsub.f32 %v132, %v458
    %460 = vmatpush1.xpose.msra.mxu0 %v459
    %461 = vmatprep.subr.mxu0 0.0
    %v462 = vand.u32 %v135, 4294901760
    %v463 = vsub.f32 %v135, %v462
    %464 = vmatpush1.xpose.msra.mxu0 %v463
    %465 = vmatprep.subr.mxu0 0.0
    %466 = vmatpush1.xpose.msra.mxu0 0.0
    %467 = vmatprep.subr.mxu0 0.0
    %468 = vmatpush1.xpose.msra.mxu0 0.0
    %469 = vmatprep.subr.mxu0 0.0
    %470 = vmatpush1.xpose.msra.mxu0 0.0
    %471 = vmatprep.subr.mxu0 0.0
    %472 = vmatpush1.xpose.msra.mxu0 0.0
    %473 = vmatprep.subr.mxu0 0.0
    %474 = vmatpush1.xpose.msra.mxu0 0.0
    %475 = vmatprep.subr.mxu0 0.0
    %476 = vmatpush1.xpose.msra.mxu0 0.0
    %477 = vmatprep.subr.mxu0 0.0
    %478 = vmatpush1.xpose.msra.mxu0 0.0
    %479 = vmatprep.subr.mxu0 0.0
    %480 = vmatpush1.xpose.msra.mxu0 0.0
    %481 = vmatprep.subr.mxu0 0.0
    %482 = vmatpush1.xpose.msra.mxu0 0.0
    %483 = vmatprep.subr.mxu0 0.0
    %484 = vmatpush1.xpose.msra.mxu0 0.0
    %485 = vmatprep.subr.mxu0 0.0
    %486 = vmatpush1.xpose.msra.mxu0 0.0
    %487 = vmatprep.subr.mxu0 0.0
    %488 = vmatpush1.xpose.msra.mxu0 0.0
    %489 = vmatprep.subr.mxu0 0.0
    %490 = vmatpush1.xpose.msra.mxu0 0.0
    %491 = vmatprep.subr.mxu0 0.0
    %492 = vmatpush1.xpose.msra.mxu0 0.0
    %493 = vmatprep.subr.mxu0 0.0
    %494 = vmatpush1.xpose.msra.mxu0 0.0
    %495 = vmatprep.subr.mxu0 0.0
    %496 = vmatpush1.xpose.msra.mxu0 0.0
    %497 = vmatprep.subr.mxu0 0.0
    %498 = vmatpush1.xpose.msra.mxu0 0.0
    %499 = vmatprep.subr.mxu0 0.0
    %500 = vmatpush1.xpose.msra.mxu0 0.0
    %501 = vmatprep.subr.mxu0 0.0
    %502 = vmatpush1.xpose.msra.mxu0 0.0
    %503 = vmatprep.subr.mxu0 0.0
    %504 = vmatpush1.xpose.msra.mxu0 0.0
    %505 = vmatprep.subr.mxu0 0.0
    %506 = vmatpush1.xpose.msra.mxu0 0.0
    %507 = vmatprep.subr.mxu0 0.0
    %508 = vmatpush1.xpose.msra.mxu0 0.0
    %509 = vmatprep.subr.mxu0 0.0
    %510 = vmatpush1.xpose.msra.mxu0 0.0
    %511 = vmatprep.subr.mxu0 0.0
    %512 = vmatpush1.xpose.msra.mxu0 0.0
    %513 = vmatprep.subr.mxu0 0.0
    %514 = vmatpush1.xpose.msra.mxu0 0.0
    %515 = vmatprep.mubr.f32.mxu0 0.0
    %v516 = vand.u32 %v93, 4294901760
    %v517 = vsub.f32 %v93, %v516
    %518 = vmatmul.mubr.f32.gmra.mrb[0].mxu0 %v517
    %v519 = vpop.f32.mrb[0].mxu0
    %v520 = vadd.f32 %v392, %v519
    %v521 = vpop.f32.mrb[0].mxu0
    %522 = vmatprep.mubr.f32.mxu0 0.0
    %v523 = vand.u32 %v96, 4294901760
    %v524 = vsub.f32 %v96, %v523
    %525 = vmatmul.mubr.f32.gmra.mrb[0].mxu0 %v524
    %v526 = vpop.f32.mrb[0].mxu0
    %v527 = vadd.f32 %v398, %v526
    %v528 = vpop.f32.mrb[0].mxu0
    %529 = vmatprep.mubr.f32.mxu0 0.0
    %v530 = vand.u32 %v99, 4294901760
    %v531 = vsub.f32 %v99, %v530
    %532 = vmatmul.mubr.f32.gmra.mrb[0].mxu0 %v531
    %v533 = vpop.f32.mrb[0].mxu0
    %v534 = vadd.f32 %v404, %v533
    %v535 = vpop.f32.mrb[0].mxu0
    %536 = vmatprep.mubr.f32.mxu0 0.0
    %v537 = vand.u32 %v102, 4294901760
    %v538 = vsub.f32 %v102, %v537
    %539 = vmatmul.mubr.f32.gmra.mrb[0].mxu0 %v538
    %v540 = vpop.f32.mrb[0].mxu0
    %v541 = vadd.f32 %v410, %v540
    %v542 = vpop.f32.mrb[0].mxu0
    %543 = vmatprep.mubr.f32.mxu0 0.0
    %v544 = vand.u32 %v105, 4294901760
    %v545 = vsub.f32 %v105, %v544
    %546 = vmatmul.mubr.f32.gmra.mrb[0].mxu0 %v545
    %v547 = vpop.f32.mrb[0].mxu0
    %v548 = vadd.f32 %v416, %v547
    %v549 = vpop.f32.mrb[0].mxu0
    %550 = vmatprep.mubr.f32.mxu0 0.0
    %v551 = vand.u32 %v108, 4294901760
    %v552 = vsub.f32 %v108, %v551
    %553 = vmatmul.mubr.f32.gmra.mrb[0].mxu0 %v552
    %v554 = vpop.f32.mrb[0].mxu0
    %v555 = vadd.f32 %v422, %v554
    %v556 = vpop.f32.mrb[0].mxu0
    %557 = vmatprep.mubr.f32.mxu0 0.0
    %v558 = vand.u32 %v111, 4294901760
    %v559 = vsub.f32 %v111, %v558
    %560 = vmatmul.mubr.f32.gmra.mrb[0].mxu0 %v559
    %v561 = vpop.f32.mrb[0].mxu0
    %v562 = vadd.f32 %v428, %v561
    %v563 = vpop.f32.mrb[0].mxu0
    %564 = vmatprep.mubr.f32.mxu0 0.0
    %v565 = vand.u32 %v114, 4294901760
    %v566 = vsub.f32 %v114, %v565
    %567 = vmatmul.mubr.f32.gmra.mrb[0].mxu0 %v566
    %v568 = vpop.f32.mrb[0].mxu0
    %v569 = vadd.f32 %v434, %v568
    %v570 = vpop.f32.mrb[0].mxu0
    %571 = vdwg.mxu0
    %572 = vmatprep.subr.mxu0 0.0
    %v573 = vand.u32 %v117, 4294901760
    %574 = vmatpush1.xpose.msra.mxu0 %v573
    %575 = vmatprep.subr.mxu0 0.0
    %v576 = vand.u32 %v120, 4294901760
    %577 = vmatpush1.xpose.msra.mxu0 %v576
    %578 = vmatprep.subr.mxu0 0.0
    %v579 = vand.u32 %v123, 4294901760
    %580 = vmatpush1.xpose.msra.mxu0 %v579
    %581 = vmatprep.subr.mxu0 0.0
    %v582 = vand.u32 %v126, 4294901760
    %583 = vmatpush1.xpose.msra.mxu0 %v582
    %584 = vmatprep.subr.mxu0 0.0
    %v585 = vand.u32 %v129, 4294901760
    %586 = vmatpush1.xpose.msra.mxu0 %v585
    %587 = vmatprep.subr.mxu0 0.0
    %v588 = vand.u32 %v132, 4294901760
    %589 = vmatpush1.xpose.msra.mxu0 %v588
    %590 = vmatprep.subr.mxu0 0.0
    %v591 = vand.u32 %v135, 4294901760
    %592 = vmatpush1.xpose.msra.mxu0 %v591
    %593 = vmatprep.subr.mxu0 0.0
    %594 = vmatpush1.xpose.msra.mxu0 0.0
    %595 = vmatprep.subr.mxu0 0.0
    %596 = vmatpush1.xpose.msra.mxu0 0.0
    %597 = vmatprep.subr.mxu0 0.0
    %598 = vmatpush1.xpose.msra.mxu0 0.0
    %599 = vmatprep.subr.mxu0 0.0
    %600 = vmatpush1.xpose.msra.mxu0 0.0
    %601 = vmatprep.subr.mxu0 0.0
    %602 = vmatpush1.xpose.msra.mxu0 0.0
    %603 = vmatprep.subr.mxu0 0.0
    %604 = vmatpush1.xpose.msra.mxu0 0.0
    %605 = vmatprep.subr.mxu0 0.0
    %606 = vmatpush1.xpose.msra.mxu0 0.0
    %607 = vmatprep.subr.mxu0 0.0
    %608 = vmatpush1.xpose.msra.mxu0 0.0
    %609 = vmatprep.subr.mxu0 0.0
    %610 = vmatpush1.xpose.msra.mxu0 0.0
    %611 = vmatprep.subr.mxu0 0.0
    %612 = vmatpush1.xpose.msra.mxu0 0.0
    %613 = vmatprep.subr.mxu0 0.0
    %614 = vmatpush1.xpose.msra.mxu0 0.0
    %615 = vmatprep.subr.mxu0 0.0
    %616 = vmatpush1.xpose.msra.mxu0 0.0
    %617 = vmatprep.subr.mxu0 0.0
    %618 = vmatpush1.xpose.msra.mxu0 0.0
    %619 = vmatprep.subr.mxu0 0.0
    %620 = vmatpush1.xpose.msra.mxu0 0.0
    %621 = vmatprep.subr.mxu0 0.0
    %622 = vmatpush1.xpose.msra.mxu0 0.0
    %623 = vmatprep.subr.mxu0 0.0
    %624 = vmatpush1.xpose.msra.mxu0 0.0
    %625 = vmatprep.subr.mxu0 0.0
    %626 = vmatpush1.xpose.msra.mxu0 0.0
    %627 = vmatprep.subr.mxu0 0.0
    %628 = vmatpush1.xpose.msra.mxu0 0.0
    %629 = vmatprep.subr.mxu0 0.0
    %630 = vmatpush1.xpose.msra.mxu0 0.0
    %631 = vmatprep.subr.mxu0 0.0
    %632 = vmatpush1.xpose.msra.mxu0 0.0
    %633 = vmatprep.subr.mxu0 0.0
    %634 = vmatpush1.xpose.msra.mxu0 0.0
    %635 = vmatprep.subr.mxu0 0.0
    %636 = vmatpush1.xpose.msra.mxu0 0.0
    %637 = vmatprep.subr.mxu0 0.0
    %638 = vmatpush1.xpose.msra.mxu0 0.0
    %639 = vmatprep.subr.mxu0 0.0
    %640 = vmatpush1.xpose.msra.mxu0 0.0
    %641 = vmatprep.subr.mxu0 0.0
    %642 = vmatpush1.xpose.msra.mxu0 0.0
    %643 = vmatprep.mubr.f32.mxu0 0.0
    %v644 = vand.u32 %v93, 4294901760
    %v645 = vsub.f32 %v93, %v644
    %v646 = vand.u32 %v645, 4294901760
    %647 = vmatmul.mubr.f32.gmra.mrb[0].mxu0 %v646
    %v648 = vpop.f32.mrb[0].mxu0
    %v649 = vadd.f32 %v520, %v648
    %v650 = vpop.f32.mrb[0].mxu0
    %651 = vmatprep.mubr.f32.mxu0 0.0
    %v652 = vand.u32 %v96, 4294901760
    %v653 = vsub.f32 %v96, %v652
    %v654 = vand.u32 %v653, 4294901760
    %655 = vmatmul.mubr.f32.gmra.mrb[0].mxu0 %v654
    %v656 = vpop.f32.mrb[0].mxu0
    %v657 = vadd.f32 %v527, %v656
    %v658 = vpop.f32.mrb[0].mxu0
    %659 = vmatprep.mubr.f32.mxu0 0.0
    %v660 = vand.u32 %v99, 4294901760
    %v661 = vsub.f32 %v99, %v660
    %v662 = vand.u32 %v661, 4294901760
    %663 = vmatmul.mubr.f32.gmra.mrb[0].mxu0 %v662
    %v664 = vpop.f32.mrb[0].mxu0
    %v665 = vadd.f32 %v534, %v664
    %v666 = vpop.f32.mrb[0].mxu0
    %667 = vmatprep.mubr.f32.mxu0 0.0
    %v668 = vand.u32 %v102, 4294901760
    %v669 = vsub.f32 %v102, %v668
    %v670 = vand.u32 %v669, 4294901760
    %671 = vmatmul.mubr.f32.gmra.mrb[0].mxu0 %v670
    %v672 = vpop.f32.mrb[0].mxu0
    %v673 = vadd.f32 %v541, %v672
    %v674 = vpop.f32.mrb[0].mxu0
    %675 = vmatprep.mubr.f32.mxu0 0.0
    %v676 = vand.u32 %v105, 4294901760
    %v677 = vsub.f32 %v105, %v676
    %v678 = vand.u32 %v677, 4294901760
    %679 = vmatmul.mubr.f32.gmra.mrb[0].mxu0 %v678
    %v680 = vpop.f32.mrb[0].mxu0
    %v681 = vadd.f32 %v548, %v680
    %v682 = vpop.f32.mrb[0].mxu0
    %683 = vmatprep.mubr.f32.mxu0 0.0
    %v684 = vand.u32 %v108, 4294901760
    %v685 = vsub.f32 %v108, %v684
    %v686 = vand.u32 %v685, 4294901760
    %687 = vmatmul.mubr.f32.gmra.mrb[0].mxu0 %v686
    %v688 = vpop.f32.mrb[0].mxu0
    %v689 = vadd.f32 %v555, %v688
    %v690 = vpop.f32.mrb[0].mxu0
    %691 = vmatprep.mubr.f32.mxu0 0.0
    %v692 = vand.u32 %v111, 4294901760
    %v693 = vsub.f32 %v111, %v692
    %v694 = vand.u32 %v693, 4294901760
    %695 = vmatmul.mubr.f32.gmra.mrb[0].mxu0 %v694
    %v696 = vpop.f32.mrb[0].mxu0
    %v697 = vadd.f32 %v562, %v696
    %v698 = vpop.f32.mrb[0].mxu0
    %699 = vmatprep.mubr.f32.mxu0 0.0
    %v700 = vand.u32 %v114, 4294901760
    %v701 = vsub.f32 %v114, %v700
    %v702 = vand.u32 %v701, 4294901760
    %703 = vmatmul.mubr.f32.gmra.mrb[0].mxu0 %v702
    %v704 = vpop.f32.mrb[0].mxu0
    %v705 = vadd.f32 %v569, %v704
    %v706 = vpop.f32.mrb[0].mxu0
    %707 = vdwg.mxu0
    %708 = vmatprep.subr.mxu0 0.0
    %v709 = vand.u32 %v117, 4294901760
    %v710 = vsub.f32 %v117, %v709
    %v711 = vand.u32 %v710, 4294901760
    %712 = vmatpush1.xpose.msra.mxu0 %v711
    %713 = vmatprep.subr.mxu0 0.0
    %v714 = vand.u32 %v120, 4294901760
    %v715 = vsub.f32 %v120, %v714
    %v716 = vand.u32 %v715, 4294901760
    %717 = vmatpush1.xpose.msra.mxu0 %v716
    %718 = vmatprep.subr.mxu0 0.0
    %v719 = vand.u32 %v123, 4294901760
    %v720 = vsub.f32 %v123, %v719
    %v721 = vand.u32 %v720, 4294901760
    %722 = vmatpush1.xpose.msra.mxu0 %v721
    %723 = vmatprep.subr.mxu0 0.0
    %v724 = vand.u32 %v126, 4294901760
    %v725 = vsub.f32 %v126, %v724
    %v726 = vand.u32 %v725, 4294901760
    %727 = vmatpush1.xpose.msra.mxu0 %v726
    %728 = vmatprep.subr.mxu0 0.0
    %v729 = vand.u32 %v129, 4294901760
    %v730 = vsub.f32 %v129, %v729
    %v731 = vand.u32 %v730, 4294901760
    %732 = vmatpush1.xpose.msra.mxu0 %v731
    %733 = vmatprep.subr.mxu0 0.0
    %v734 = vand.u32 %v132, 4294901760
    %v735 = vsub.f32 %v132, %v734
    %v736 = vand.u32 %v735, 4294901760
    %737 = vmatpush1.xpose.msra.mxu0 %v736
    %738 = vmatprep.subr.mxu0 0.0
    %v739 = vand.u32 %v135, 4294901760
    %v740 = vsub.f32 %v135, %v739
    %v741 = vand.u32 %v740, 4294901760
    %742 = vmatpush1.xpose.msra.mxu0 %v741
    %743 = vmatprep.subr.mxu0 0.0
    %744 = vmatpush1.xpose.msra.mxu0 0.0
    %745 = vmatprep.subr.mxu0 0.0
    %746 = vmatpush1.xpose.msra.mxu0 0.0
    %747 = vmatprep.subr.mxu0 0.0
    %748 = vmatpush1.xpose.msra.mxu0 0.0
    %749 = vmatprep.subr.mxu0 0.0
    %750 = vmatpush1.xpose.msra.mxu0 0.0
    %751 = vmatprep.subr.mxu0 0.0
    %752 = vmatpush1.xpose.msra.mxu0 0.0
    %753 = vmatprep.subr.mxu0 0.0
    %754 = vmatpush1.xpose.msra.mxu0 0.0
    %755 = vmatprep.subr.mxu0 0.0
    %756 = vmatpush1.xpose.msra.mxu0 0.0
    %757 = vmatprep.subr.mxu0 0.0
    %758 = vmatpush1.xpose.msra.mxu0 0.0
    %759 = vmatprep.subr.mxu0 0.0
    %760 = vmatpush1.xpose.msra.mxu0 0.0
    %761 = vmatprep.subr.mxu0 0.0
    %762 = vmatpush1.xpose.msra.mxu0 0.0
    %763 = vmatprep.subr.mxu0 0.0
    %764 = vmatpush1.xpose.msra.mxu0 0.0
    %765 = vmatprep.subr.mxu0 0.0
    %766 = vmatpush1.xpose.msra.mxu0 0.0
    %767 = vmatprep.subr.mxu0 0.0
    %768 = vmatpush1.xpose.msra.mxu0 0.0
    %769 = vmatprep.subr.mxu0 0.0
    %770 = vmatpush1.xpose.msra.mxu0 0.0
    %771 = vmatprep.subr.mxu0 0.0
    %772 = vmatpush1.xpose.msra.mxu0 0.0
    %773 = vmatprep.subr.mxu0 0.0
    %774 = vmatpush1.xpose.msra.mxu0 0.0
    %775 = vmatprep.subr.mxu0 0.0
    %776 = vmatpush1.xpose.msra.mxu0 0.0
    %777 = vmatprep.subr.mxu0 0.0
    %778 = vmatpush1.xpose.msra.mxu0 0.0
    %779 = vmatprep.subr.mxu0 0.0
    %780 = vmatpush1.xpose.msra.mxu0 0.0
    %781 = vmatprep.subr.mxu0 0.0
    %782 = vmatpush1.xpose.msra.mxu0 0.0
    %783 = vmatprep.subr.mxu0 0.0
    %784 = vmatpush1.xpose.msra.mxu0 0.0
    %785 = vmatprep.subr.mxu0 0.0
    %786 = vmatpush1.xpose.msra.mxu0 0.0
    %787 = vmatprep.subr.mxu0 0.0
    %788 = vmatpush1.xpose.msra.mxu0 0.0
    %789 = vmatprep.subr.mxu0 0.0
    %790 = vmatpush1.xpose.msra.mxu0 0.0
    %791 = vmatprep.subr.mxu0 0.0
    %792 = vmatpush1.xpose.msra.mxu0 0.0
    %793 = vmatprep.mubr.f32.mxu0 0.0
    %v794 = vand.u32 %v93, 4294901760
    %795 = vmatmul.mubr.f32.gmra.mrb[0].mxu0 %v794
    %v796 = vpop.f32.mrb[0].mxu0
    %v797 = vadd.f32 %v649, %v796
    %v798 = vpop.f32.mrb[0].mxu0
    %799 = vmatprep.mubr.f32.mxu0 0.0
    %v800 = vand.u32 %v96, 4294901760
    %801 = vmatmul.mubr.f32.gmra.mrb[0].mxu0 %v800
    %v802 = vpop.f32.mrb[0].mxu0
    %v803 = vadd.f32 %v657, %v802
    %v804 = vpop.f32.mrb[0].mxu0
    %805 = vmatprep.mubr.f32.mxu0 0.0
    %v806 = vand.u32 %v99, 4294901760
    %807 = vmatmul.mubr.f32.gmra.mrb[0].mxu0 %v806
    %v808 = vpop.f32.mrb[0].mxu0
    %v809 = vadd.f32 %v665, %v808
    %v810 = vpop.f32.mrb[0].mxu0
    %811 = vmatprep.mubr.f32.mxu0 0.0
    %v812 = vand.u32 %v102, 4294901760
    %813 = vmatmul.mubr.f32.gmra.mrb[0].mxu0 %v812
    %v814 = vpop.f32.mrb[0].mxu0
    %v815 = vadd.f32 %v673, %v814
    %v816 = vpop.f32.mrb[0].mxu0
    %817 = vmatprep.mubr.f32.mxu0 0.0
    %v818 = vand.u32 %v105, 4294901760
    %819 = vmatmul.mubr.f32.gmra.mrb[0].mxu0 %v818
    %v820 = vpop.f32.mrb[0].mxu0
    %v821 = vadd.f32 %v681, %v820
    %v822 = vpop.f32.mrb[0].mxu0
    %823 = vmatprep.mubr.f32.mxu0 0.0
    %v824 = vand.u32 %v108, 4294901760
    %825 = vmatmul.mubr.f32.gmra.mrb[0].mxu0 %v824
    %v826 = vpop.f32.mrb[0].mxu0
    %v827 = vadd.f32 %v689, %v826
    %v828 = vpop.f32.mrb[0].mxu0
    %829 = vmatprep.mubr.f32.mxu0 0.0
    %v830 = vand.u32 %v111, 4294901760
    %831 = vmatmul.mubr.f32.gmra.mrb[0].mxu0 %v830
    %v832 = vpop.f32.mrb[0].mxu0
    %v833 = vadd.f32 %v697, %v832
    %v834 = vpop.f32.mrb[0].mxu0
    %835 = vmatprep.mubr.f32.mxu0 0.0
    %v836 = vand.u32 %v114, 4294901760
    %837 = vmatmul.mubr.f32.gmra.mrb[0].mxu0 %v836
    %v838 = vpop.f32.mrb[0].mxu0
    %v839 = vadd.f32 %v705, %v838
    %v840 = vpop.f32.mrb[0].mxu0
    %841 = vdwg.mxu0
    %842 = vmatprep.subr.mxu0 0.0
    %v843 = vand.u32 %v117, 4294901760
    %844 = vmatpush1.xpose.msra.mxu0 %v843
    %845 = vmatprep.subr.mxu0 0.0
    %v846 = vand.u32 %v120, 4294901760
    %847 = vmatpush1.xpose.msra.mxu0 %v846
    %848 = vmatprep.subr.mxu0 0.0
    %v849 = vand.u32 %v123, 4294901760
    %850 = vmatpush1.xpose.msra.mxu0 %v849
    %851 = vmatprep.subr.mxu0 0.0
    %v852 = vand.u32 %v126, 4294901760
    %853 = vmatpush1.xpose.msra.mxu0 %v852
    %854 = vmatprep.subr.mxu0 0.0
    %v855 = vand.u32 %v129, 4294901760
    %856 = vmatpush1.xpose.msra.mxu0 %v855
    %857 = vmatprep.subr.mxu0 0.0
    %v858 = vand.u32 %v132, 4294901760
    %859 = vmatpush1.xpose.msra.mxu0 %v858
    %860 = vmatprep.subr.mxu0 0.0
    %v861 = vand.u32 %v135, 4294901760
    %862 = vmatpush1.xpose.msra.mxu0 %v861
    %863 = vmatprep.subr.mxu0 0.0
    %864 = vmatpush1.xpose.msra.mxu0 0.0
    %865 = vmatprep.subr.mxu0 0.0
    %866 = vmatpush1.xpose.msra.mxu0 0.0
    %867 = vmatprep.subr.mxu0 0.0
    %868 = vmatpush1.xpose.msra.mxu0 0.0
    %869 = vmatprep.subr.mxu0 0.0
    %870 = vmatpush1.xpose.msra.mxu0 0.0
    %871 = vmatprep.subr.mxu0 0.0
    %872 = vmatpush1.xpose.msra.mxu0 0.0
    %873 = vmatprep.subr.mxu0 0.0
    %874 = vmatpush1.xpose.msra.mxu0 0.0
    %875 = vmatprep.subr.mxu0 0.0
    %876 = vmatpush1.xpose.msra.mxu0 0.0
    %877 = vmatprep.subr.mxu0 0.0
    %878 = vmatpush1.xpose.msra.mxu0 0.0
    %879 = vmatprep.subr.mxu0 0.0
    %880 = vmatpush1.xpose.msra.mxu0 0.0
    %881 = vmatprep.subr.mxu0 0.0
    %882 = vmatpush1.xpose.msra.mxu0 0.0
    %883 = vmatprep.subr.mxu0 0.0
    %884 = vmatpush1.xpose.msra.mxu0 0.0
    %885 = vmatprep.subr.mxu0 0.0
    %886 = vmatpush1.xpose.msra.mxu0 0.0
    %887 = vmatprep.subr.mxu0 0.0
    %888 = vmatpush1.xpose.msra.mxu0 0.0
    %889 = vmatprep.subr.mxu0 0.0
    %890 = vmatpush1.xpose.msra.mxu0 0.0
    %891 = vmatprep.subr.mxu0 0.0
    %892 = vmatpush1.xpose.msra.mxu0 0.0
    %893 = vmatprep.subr.mxu0 0.0
    %894 = vmatpush1.xpose.msra.mxu0 0.0
    %895 = vmatprep.subr.mxu0 0.0
    %896 = vmatpush1.xpose.msra.mxu0 0.0
    %897 = vmatprep.subr.mxu0 0.0
    %898 = vmatpush1.xpose.msra.mxu0 0.0
    %899 = vmatprep.subr.mxu0 0.0
    %900 = vmatpush1.xpose.msra.mxu0 0.0
    %901 = vmatprep.subr.mxu0 0.0
    %902 = vmatpush1.xpose.msra.mxu0 0.0
    %903 = vmatprep.subr.mxu0 0.0
    %904 = vmatpush1.xpose.msra.mxu0 0.0
    %905 = vmatprep.subr.mxu0 0.0
    %906 = vmatpush1.xpose.msra.mxu0 0.0
    %907 = vmatprep.subr.mxu0 0.0
    %908 = vmatpush1.xpose.msra.mxu0 0.0
    %909 = vmatprep.subr.mxu0 0.0
    %910 = vmatpush1.xpose.msra.mxu0 0.0
    %911 = vmatprep.subr.mxu0 0.0
    %912 = vmatpush1.xpose.msra.mxu0 0.0
    %913 = vmatprep.mubr.f32.mxu0 0.0
    %v914 = vand.u32 %v93, 4294901760
    %915 = vmatmul.mubr.f32.gmra.mrb[0].mxu0 %v914
    %v916 = vpop.f32.mrb[0].mxu0
    %v917 = vadd.f32 %v797, %v916
    %v918 = vpop.f32.mrb[0].mxu0
    %919 = vmatprep.mubr.f32.mxu0 0.0
    %v920 = vand.u32 %v96, 4294901760
    %921 = vmatmul.mubr.f32.gmra.mrb[0].mxu0 %v920
    %v922 = vpop.f32.mrb[0].mxu0
    %v923 = vadd.f32 %v803, %v922
    %v924 = vpop.f32.mrb[0].mxu0
    %925 = vmatprep.mubr.f32.mxu0 0.0
    %v926 = vand.u32 %v99, 4294901760
    %927 = vmatmul.mubr.f32.gmra.mrb[0].mxu0 %v926
    %v928 = vpop.f32.mrb[0].mxu0
    %v929 = vadd.f32 %v809, %v928
    %v930 = vpop.f32.mrb[0].mxu0
    %931 = vmatprep.mubr.f32.mxu0 0.0
    %v932 = vand.u32 %v102, 4294901760
    %933 = vmatmul.mubr.f32.gmra.mrb[0].mxu0 %v932
    %v934 = vpop.f32.mrb[0].mxu0
    %v935 = vadd.f32 %v815, %v934
    %v936 = vpop.f32.mrb[0].mxu0
    %937 = vmatprep.mubr.f32.mxu0 0.0
    %v938 = vand.u32 %v105, 4294901760
    %939 = vmatmul.mubr.f32.gmra.mrb[0].mxu0 %v938
    %v940 = vpop.f32.mrb[0].mxu0
    %v941 = vadd.f32 %v821, %v940
    %v942 = vpop.f32.mrb[0].mxu0
    %943 = vmatprep.mubr.f32.mxu0 0.0
    %v944 = vand.u32 %v108, 4294901760
    %945 = vmatmul.mubr.f32.gmra.mrb[0].mxu0 %v944
    %v946 = vpop.f32.mrb[0].mxu0
    %v947 = vadd.f32 %v827, %v946
    %v948 = vpop.f32.mrb[0].mxu0
    %949 = vmatprep.mubr.f32.mxu0 0.0
    %v950 = vand.u32 %v111, 4294901760
    %951 = vmatmul.mubr.f32.gmra.mrb[0].mxu0 %v950
    %v952 = vpop.f32.mrb[0].mxu0
    %v953 = vadd.f32 %v833, %v952
    %v954 = vpop.f32.mrb[0].mxu0
    %955 = vmatprep.mubr.f32.mxu0 0.0
    %v956 = vand.u32 %v114, 4294901760
    %957 = vmatmul.mubr.f32.gmra.mrb[0].mxu0 %v956
    %v958 = vpop.f32.mrb[0].mxu0
    %v959 = vadd.f32 %v839, %v958
    %v960 = vpop.f32.mrb[0].mxu0
    %961 = vdwg.mxu0
    %v962 = vtanh.pop %v917
    %v963 = vtanh.pop %v923
    %v964 = vtanh.pop %v929
    %v965 = vtanh.pop %v935
    %v966 = vtanh.pop %v941
    %v967 = vtanh.pop %v947
    %v968 = vtanh.pop %v953
    %v969 = vtanh.pop %v959
    %v970 = vld [vmem:[%s3] sm:$0xff]
    %v971 = vld [vmem:[%s3 + $0x8] sm:$0xff]
    %v972 = vld [vmem:[%s3 + $0x10] sm:$0xff]
    %v973 = vld [vmem:[%s3 + $0x18] sm:$0xff]
    %v974 = vld [vmem:[%s3 + $0x20] sm:$0xff]
    %v975 = vld [vmem:[%s3 + $0x28] sm:$0xff]
    %v976 = vld [vmem:[%s3 + $0x30] sm:$0xff]
    %v977 = vld [vmem:[%s3 + $0x38] sm:$0xff]
    %v978 = vld [vmem:[%s4] sm:$0xff]
    %v979 = vld [vmem:[%s4 + $0x8] sm:$0xff]
    %v980 = vld [vmem:[%s4 + $0x10] sm:$0xff]
    %v981 = vld [vmem:[%s4 + $0x18] sm:$0xff]
    %v982 = vld [vmem:[%s4 + $0x20] sm:$0xff]
    %v983 = vld [vmem:[%s4 + $0x28] sm:$0xff]
    %v984 = vld [vmem:[%s4 + $0x30] sm:$0xff]
    %v985 = vld [vmem:[%s4 + $0x38] sm:$0xff]
    %987 = vset.pattern.permute.xlu0 0
    %988 = vperm.xlu0 %987, %v978
    %v989 = vpop.permute.xlu0 %988
    %992 = vset.pattern.permute.xlu0 0
    %993 = vperm.xlu0 %992, %v979
    %v994 = vpop.permute.xlu0 %993
    %997 = vset.pattern.permute.xlu0 0
    %998 = vperm.xlu0 %997, %v980
    %v999 = vpop.permute.xlu0 %998
    %1002 = vset.pattern.permute.xlu0 0
    %1003 = vperm.xlu0 %1002, %v981
    %v1004 = vpop.permute.xlu0 %1003
    %1007 = vset.pattern.permute.xlu0 0
    %1008 = vperm.xlu0 %1007, %v982
    %v1009 = vpop.permute.xlu0 %1008
    %1012 = vset.pattern.permute.xlu0 0
    %1013 = vperm.xlu0 %1012, %v983
    %v1014 = vpop.permute.xlu0 %1013
    %1017 = vset.pattern.permute.xlu0 0
    %1018 = vperm.xlu0 %1017, %v984
    %v1019 = vpop.permute.xlu0 %1018
    %1022 = vset.pattern.permute.xlu0 0
    %1023 = vperm.xlu0 %1022, %v985
    %v1024 = vpop.permute.xlu0 %1023
    %vm1026 = vcmask 523264
    %v1028 = vsel %vm1026, %v970, 0
    %v1031 = vsel %vm1026, %v971, 0
    %v1034 = vsel %vm1026, %v972, 0
    %v1037 = vsel %vm1026, %v973, 0
    %v1040 = vsel %vm1026, %v974, 0
    %v1043 = vsel %vm1026, %v975, 0
    %v1046 = vsel %vm1026, %v976, 0
    %v1049 = vsel %vm1026, %v977, 0
    %1051 = vmatprep.subr.mxu0 0.0
    %v1052 = vand.u32 %v962, 4294901760
    %1053 = vmatpush1.msra.mxu0 %v1052
    %1054 = vmatprep.subr.mxu0 0.0
    %v1055 = vand.u32 %v963, 4294901760
    %1056 = vmatpush1.msra.mxu0 %v1055
    %1057 = vmatprep.subr.mxu0 0.0
    %v1058 = vand.u32 %v964, 4294901760
    %1059 = vmatpush1.msra.mxu0 %v1058
    %1060 = vmatprep.subr.mxu0 0.0
    %v1061 = vand.u32 %v965, 4294901760
    %1062 = vmatpush1.msra.mxu0 %v1061
    %1063 = vmatprep.subr.mxu0 0.0
    %v1064 = vand.u32 %v966, 4294901760
    %1065 = vmatpush1.msra.mxu0 %v1064
    %1066 = vmatprep.subr.mxu0 0.0
    %v1067 = vand.u32 %v967, 4294901760
    %1068 = vmatpush1.msra.mxu0 %v1067
    %1069 = vmatprep.subr.mxu0 0.0
    %v1070 = vand.u32 %v968, 4294901760
    %1071 = vmatpush1.msra.mxu0 %v1070
    %1072 = vmatprep.subr.mxu0 0.0
    %v1073 = vand.u32 %v969, 4294901760
    %1074 = vmatpush1.msra.mxu0 %v1073
    %1075 = vmatprep.subr.mxu0 0.0
    %1076 = vmatpush1.msra.mxu0 0.0
    %1077 = vmatprep.subr.mxu0 0.0
    %1078 = vmatpush1.msra.mxu0 0.0
    %1079 = vmatprep.subr.mxu0 0.0
    %1080 = vmatpush1.msra.mxu0 0.0
    %1081 = vmatprep.subr.mxu0 0.0
    %1082 = vmatpush1.msra.mxu0 0.0
    %1083 = vmatprep.subr.mxu0 0.0
    %1084 = vmatpush1.msra.mxu0 0.0
    %1085 = vmatprep.subr.mxu0 0.0
    %1086 = vmatpush1.msra.mxu0 0.0
    %1087 = vmatprep.subr.mxu0 0.0
    %1088 = vmatpush1.msra.mxu0 0.0
    %1089 = vmatprep.subr.mxu0 0.0
    %1090 = vmatpush1.msra.mxu0 0.0
    %1091 = vmatprep.subr.mxu0 0.0
    %1092 = vmatpush1.msra.mxu0 0.0
    %1093 = vmatprep.subr.mxu0 0.0
    %1094 = vmatpush1.msra.mxu0 0.0
    %1095 = vmatprep.subr.mxu0 0.0
    %1096 = vmatpush1.msra.mxu0 0.0
    %1097 = vmatprep.subr.mxu0 0.0
    %1098 = vmatpush1.msra.mxu0 0.0
    %1099 = vmatprep.subr.mxu0 0.0
    %1100 = vmatpush1.msra.mxu0 0.0
    %1101 = vmatprep.subr.mxu0 0.0
    %1102 = vmatpush1.msra.mxu0 0.0
    %1103 = vmatprep.subr.mxu0 0.0
    %1104 = vmatpush1.msra.mxu0 0.0
    %1105 = vmatprep.subr.mxu0 0.0
    %1106 = vmatpush1.msra.mxu0 0.0
    %1107 = vmatprep.subr.mxu0 0.0
    %1108 = vmatpush1.msra.mxu0 0.0
    %1109 = vmatprep.subr.mxu0 0.0
    %1110 = vmatpush1.msra.mxu0 0.0
    %1111 = vmatprep.subr.mxu0 0.0
    %1112 = vmatpush1.msra.mxu0 0.0
    %1113 = vmatprep.subr.mxu0 0.0
    %1114 = vmatpush1.msra.mxu0 0.0
    %1115 = vmatprep.subr.mxu0 0.0
    %1116 = vmatpush1.msra.mxu0 0.0
    %1117 = vmatprep.subr.mxu0 0.0
    %1118 = vmatpush1.msra.mxu0 0.0
    %1119 = vmatprep.subr.mxu0 0.0
    %1120 = vmatpush1.msra.mxu0 0.0
    %1121 = vmatprep.subr.mxu0 0.0
    %1122 = vmatpush1.msra.mxu0 0.0
    %1123 = vmatprep.mubr.f32.mxu0 0.0
    %v1124 = vand.u32 %v1028, 4294901760
    %v1125 = vsub.f32 %v1028, %v1124
    %v1126 = vand.u32 %v1125, 4294901760
    %v1127 = vsub.f32 %v1125, %v1126
    %v1128 = vand.u32 %v1127, 4294901760
    %1129 = vmatmul.mubr.f32.gmra.mrb[0].mxu0 %v1128
    %v1130 = vpop.f32.mrb[0].mxu0
    %v1131 = vadd.f32 %v989, %v1130
    %v1132 = vpop.f32.mrb[0].mxu0
    %1133 = vmatprep.mubr.f32.mxu0 0.0
    %v1134 = vand.u32 %v1031, 4294901760
    %v1135 = vsub.f32 %v1031, %v1134
    %v1136 = vand.u32 %v1135, 4294901760
    %v1137 = vsub.f32 %v1135, %v1136
    %v1138 = vand.u32 %v1137, 4294901760
    %1139 = vmatmul.mubr.f32.gmra.mrb[0].mxu0 %v1138
    %v1140 = vpop.f32.mrb[0].mxu0
    %v1141 = vadd.f32 %v994, %v1140
    %v1142 = vpop.f32.mrb[0].mxu0
    %1143 = vmatprep.mubr.f32.mxu0 0.0
    %v1144 = vand.u32 %v1034, 4294901760
    %v1145 = vsub.f32 %v1034, %v1144
    %v1146 = vand.u32 %v1145, 4294901760
    %v1147 = vsub.f32 %v1145, %v1146
    %v1148 = vand.u32 %v1147, 4294901760
    %1149 = vmatmul.mubr.f32.gmra.mrb[0].mxu0 %v1148
    %v1150 = vpop.f32.mrb[0].mxu0
    %v1151 = vadd.f32 %v999, %v1150
    %v1152 = vpop.f32.mrb[0].mxu0
    %1153 = vmatprep.mubr.f32.mxu0 0.0
    %v1154 = vand.u32 %v1037, 4294901760
    %v1155 = vsub.f32 %v1037, %v1154
    %v1156 = vand.u32 %v1155, 4294901760
    %v1157 = vsub.f32 %v1155, %v1156
    %v1158 = vand.u32 %v1157, 4294901760
    %1159 = vmatmul.mubr.f32.gmra.mrb[0].mxu0 %v1158
    %v1160 = vpop.f32.mrb[0].mxu0
    %v1161 = vadd.f32 %v1004, %v1160
    %v1162 = vpop.f32.mrb[0].mxu0
    %1163 = vmatprep.mubr.f32.mxu0 0.0
    %v1164 = vand.u32 %v1040, 4294901760
    %v1165 = vsub.f32 %v1040, %v1164
    %v1166 = vand.u32 %v1165, 4294901760
    %v1167 = vsub.f32 %v1165, %v1166
    %v1168 = vand.u32 %v1167, 4294901760
    %1169 = vmatmul.mubr.f32.gmra.mrb[0].mxu0 %v1168
    %v1170 = vpop.f32.mrb[0].mxu0
    %v1171 = vadd.f32 %v1009, %v1170
    %v1172 = vpop.f32.mrb[0].mxu0
    %1173 = vmatprep.mubr.f32.mxu0 0.0
    %v1174 = vand.u32 %v1043, 4294901760
    %v1175 = vsub.f32 %v1043, %v1174
    %v1176 = vand.u32 %v1175, 4294901760
    %v1177 = vsub.f32 %v1175, %v1176
    %v1178 = vand.u32 %v1177, 4294901760
    %1179 = vmatmul.mubr.f32.gmra.mrb[0].mxu0 %v1178
    %v1180 = vpop.f32.mrb[0].mxu0
    %v1181 = vadd.f32 %v1014, %v1180
    %v1182 = vpop.f32.mrb[0].mxu0
    %1183 = vmatprep.mubr.f32.mxu0 0.0
    %v1184 = vand.u32 %v1046, 4294901760
    %v1185 = vsub.f32 %v1046, %v1184
    %v1186 = vand.u32 %v1185, 4294901760
    %v1187 = vsub.f32 %v1185, %v1186
    %v1188 = vand.u32 %v1187, 4294901760
    %1189 = vmatmul.mubr.f32.gmra.mrb[0].mxu0 %v1188
    %v1190 = vpop.f32.mrb[0].mxu0
    %v1191 = vadd.f32 %v1019, %v1190
    %v1192 = vpop.f32.mrb[0].mxu0
    %1193 = vmatprep.mubr.f32.mxu0 0.0
    %v1194 = vand.u32 %v1049, 4294901760
    %v1195 = vsub.f32 %v1049, %v1194
    %v1196 = vand.u32 %v1195, 4294901760
    %v1197 = vsub.f32 %v1195, %v1196
    %v1198 = vand.u32 %v1197, 4294901760
    %1199 = vmatmul.mubr.f32.gmra.mrb[0].mxu0 %v1198
    %v1200 = vpop.f32.mrb[0].mxu0
    %v1201 = vadd.f32 %v1024, %v1200
    %v1202 = vpop.f32.mrb[0].mxu0
    %1203 = vdwg.mxu0
    %1204 = vmatprep.subr.mxu0 0.0
    %v1205 = vand.u32 %v962, 4294901760
    %v1206 = vsub.f32 %v962, %v1205
    %v1207 = vand.u32 %v1206, 4294901760
    %v1208 = vsub.f32 %v1206, %v1207
    %v1209 = vand.u32 %v1208, 4294901760
    %1210 = vmatpush1.msra.mxu0 %v1209
    %1211 = vmatprep.subr.mxu0 0.0
    %v1212 = vand.u32 %v963, 4294901760
    %v1213 = vsub.f32 %v963, %v1212
    %v1214 = vand.u32 %v1213, 4294901760
    %v1215 = vsub.f32 %v1213, %v1214
    %v1216 = vand.u32 %v1215, 4294901760
    %1217 = vmatpush1.msra.mxu0 %v1216
    %1218 = vmatprep.subr.mxu0 0.0
    %v1219 = vand.u32 %v964, 4294901760
    %v1220 = vsub.f32 %v964, %v1219
    %v1221 = vand.u32 %v1220, 4294901760
    %v1222 = vsub.f32 %v1220, %v1221
    %v1223 = vand.u32 %v1222, 4294901760
    %1224 = vmatpush1.msra.mxu0 %v1223
    %1225 = vmatprep.subr.mxu0 0.0
    %v1226 = vand.u32 %v965, 4294901760
    %v1227 = vsub.f32 %v965, %v1226
    %v1228 = vand.u32 %v1227, 4294901760
    %v1229 = vsub.f32 %v1227, %v1228
    %v1230 = vand.u32 %v1229, 4294901760
    %1231 = vmatpush1.msra.mxu0 %v1230
    %1232 = vmatprep.subr.mxu0 0.0
    %v1233 = vand.u32 %v966, 4294901760
    %v1234 = vsub.f32 %v966, %v1233
    %v1235 = vand.u32 %v1234, 4294901760
    %v1236 = vsub.f32 %v1234, %v1235
    %v1237 = vand.u32 %v1236, 4294901760
    %1238 = vmatpush1.msra.mxu0 %v1237
    %1239 = vmatprep.subr.mxu0 0.0
    %v1240 = vand.u32 %v967, 4294901760
    %v1241 = vsub.f32 %v967, %v1240
    %v1242 = vand.u32 %v1241, 4294901760
    %v1243 = vsub.f32 %v1241, %v1242
    %v1244 = vand.u32 %v1243, 4294901760
    %1245 = vmatpush1.msra.mxu0 %v1244
    %1246 = vmatprep.subr.mxu0 0.0
    %v1247 = vand.u32 %v968, 4294901760
    %v1248 = vsub.f32 %v968, %v1247
    %v1249 = vand.u32 %v1248, 4294901760
    %v1250 = vsub.f32 %v1248, %v1249
    %v1251 = vand.u32 %v1250, 4294901760
    %1252 = vmatpush1.msra.mxu0 %v1251
    %1253 = vmatprep.subr.mxu0 0.0
    %v1254 = vand.u32 %v969, 4294901760
    %v1255 = vsub.f32 %v969, %v1254
    %v1256 = vand.u32 %v1255, 4294901760
    %v1257 = vsub.f32 %v1255, %v1256
    %v1258 = vand.u32 %v1257, 4294901760
    %1259 = vmatpush1.msra.mxu0 %v1258
    %1260 = vmatprep.subr.mxu0 0.0
    %1261 = vmatpush1.msra.mxu0 0.0
    %1262 = vmatprep.subr.mxu0 0.0
    %1263 = vmatpush1.msra.mxu0 0.0
    %1264 = vmatprep.subr.mxu0 0.0
    %1265 = vmatpush1.msra.mxu0 0.0
    %1266 = vmatprep.subr.mxu0 0.0
    %1267 = vmatpush1.msra.mxu0 0.0
    %1268 = vmatprep.subr.mxu0 0.0
    %1269 = vmatpush1.msra.mxu0 0.0
    %1270 = vmatprep.subr.mxu0 0.0
    %1271 = vmatpush1.msra.mxu0 0.0
    %1272 = vmatprep.subr.mxu0 0.0
    %1273 = vmatpush1.msra.mxu0 0.0
    %1274 = vmatprep.subr.mxu0 0.0
    %1275 = vmatpush1.msra.mxu0 0.0
    %1276 = vmatprep.subr.mxu0 0.0
    %1277 = vmatpush1.msra.mxu0 0.0
    %1278 = vmatprep.subr.mxu0 0.0
    %1279 = vmatpush1.msra.mxu0 0.0
    %1280 = vmatprep.subr.mxu0 0.0
    %1281 = vmatpush1.msra.mxu0 0.0
    %1282 = vmatprep.subr.mxu0 0.0
    %1283 = vmatpush1.msra.mxu0 0.0
    %1284 = vmatprep.subr.mxu0 0.0
    %1285 = vmatpush1.msra.mxu0 0.0
    %1286 = vmatprep.subr.mxu0 0.0
    %1287 = vmatpush1.msra.mxu0 0.0
    %1288 = vmatprep.subr.mxu0 0.0
    %1289 = vmatpush1.msra.mxu0 0.0
    %1290 = vmatprep.subr.mxu0 0.0
    %1291 = vmatpush1.msra.mxu0 0.0
    %1292 = vmatprep.subr.mxu0 0.0
    %1293 = vmatpush1.msra.mxu0 0.0
    %1294 = vmatprep.subr.mxu0 0.0
    %1295 = vmatpush1.msra.mxu0 0.0
    %1296 = vmatprep.subr.mxu0 0.0
    %1297 = vmatpush1.msra.mxu0 0.0
    %1298 = vmatprep.subr.mxu0 0.0
    %1299 = vmatpush1.msra.mxu0 0.0
    %1300 = vmatprep.subr.mxu0 0.0
    %1301 = vmatpush1.msra.mxu0 0.0
    %1302 = vmatprep.subr.mxu0 0.0
    %1303 = vmatpush1.msra.mxu0 0.0
    %1304 = vmatprep.subr.mxu0 0.0
    %1305 = vmatpush1.msra.mxu0 0.0
    %1306 = vmatprep.subr.mxu0 0.0
    %1307 = vmatpush1.msra.mxu0 0.0
    %1308 = vmatprep.mubr.f32.mxu0 0.0
    %v1309 = vand.u32 %v1028, 4294901760
    %1310 = vmatmul.mubr.f32.gmra.mrb[0].mxu0 %v1309
    %v1311 = vpop.f32.mrb[0].mxu0
    %v1312 = vadd.f32 %v1131, %v1311
    %v1313 = vpop.f32.mrb[0].mxu0
    %1314 = vmatprep.mubr.f32.mxu0 0.0
    %v1315 = vand.u32 %v1031, 4294901760
    %1316 = vmatmul.mubr.f32.gmra.mrb[0].mxu0 %v1315
    %v1317 = vpop.f32.mrb[0].mxu0
    %v1318 = vadd.f32 %v1141, %v1317
    %v1319 = vpop.f32.mrb[0].mxu0
    %1320 = vmatprep.mubr.f32.mxu0 0.0
    %v1321 = vand.u32 %v1034, 4294901760
    %1322 = vmatmul.mubr.f32.gmra.mrb[0].mxu0 %v1321
    %v1323 = vpop.f32.mrb[0].mxu0
    %v1324 = vadd.f32 %v1151, %v1323
    %v1325 = vpop.f32.mrb[0].mxu0
    %1326 = vmatprep.mubr.f32.mxu0 0.0
    %v1327 = vand.u32 %v1037, 4294901760
    %1328 = vmatmul.mubr.f32.gmra.mrb[0].mxu0 %v1327
    %v1329 = vpop.f32.mrb[0].mxu0
    %v1330 = vadd.f32 %v1161, %v1329
    %v1331 = vpop.f32.mrb[0].mxu0
    %1332 = vmatprep.mubr.f32.mxu0 0.0
    %v1333 = vand.u32 %v1040, 4294901760
    %1334 = vmatmul.mubr.f32.gmra.mrb[0].mxu0 %v1333
    %v1335 = vpop.f32.mrb[0].mxu0
    %v1336 = vadd.f32 %v1171, %v1335
    %v1337 = vpop.f32.mrb[0].mxu0
    %1338 = vmatprep.mubr.f32.mxu0 0.0
    %v1339 = vand.u32 %v1043, 4294901760
    %1340 = vmatmul.mubr.f32.gmra.mrb[0].mxu0 %v1339
    %v1341 = vpop.f32.mrb[0].mxu0
    %v1342 = vadd.f32 %v1181, %v1341
    %v1343 = vpop.f32.mrb[0].mxu0
    %1344 = vmatprep.mubr.f32.mxu0 0.0
    %v1345 = vand.u32 %v1046, 4294901760
    %1346 = vmatmul.mubr.f32.gmra.mrb[0].mxu0 %v1345
    %v1347 = vpop.f32.mrb[0].mxu0
    %v1348 = vadd.f32 %v1191, %v1347
    %v1349 = vpop.f32.mrb[0].mxu0
    %1350 = vmatprep.mubr.f32.mxu0 0.0
    %v1351 = vand.u32 %v1049, 4294901760
    %1352 = vmatmul.mubr.f32.gmra.mrb[0].mxu0 %v1351
    %v1353 = vpop.f32.mrb[0].mxu0
    %v1354 = vadd.f32 %v1201, %v1353
    %v1355 = vpop.f32.mrb[0].mxu0
    %1356 = vdwg.mxu0
    %1357 = vmatprep.subr.mxu0 0.0
    %v1358 = vand.u32 %v962, 4294901760
    %v1359 = vsub.f32 %v962, %v1358
    %1360 = vmatpush1.msra.mxu0 %v1359
    %1361 = vmatprep.subr.mxu0 0.0
    %v1362 = vand.u32 %v963, 4294901760
    %v1363 = vsub.f32 %v963, %v1362
    %1364 = vmatpush1.msra.mxu0 %v1363
    %1365 = vmatprep.subr.mxu0 0.0
    %v1366 = vand.u32 %v964, 4294901760
    %v1367 = vsub.f32 %v964, %v1366
    %1368 = vmatpush1.msra.mxu0 %v1367
    %1369 = vmatprep.subr.mxu0 0.0
    %v1370 = vand.u32 %v965, 4294901760
    %v1371 = vsub.f32 %v965, %v1370
    %1372 = vmatpush1.msra.mxu0 %v1371
    %1373 = vmatprep.subr.mxu0 0.0
    %v1374 = vand.u32 %v966, 4294901760
    %v1375 = vsub.f32 %v966, %v1374
    %1376 = vmatpush1.msra.mxu0 %v1375
    %1377 = vmatprep.subr.mxu0 0.0
    %v1378 = vand.u32 %v967, 4294901760
    %v1379 = vsub.f32 %v967, %v1378
    %1380 = vmatpush1.msra.mxu0 %v1379
    %1381 = vmatprep.subr.mxu0 0.0
    %v1382 = vand.u32 %v968, 4294901760
    %v1383 = vsub.f32 %v968, %v1382
    %1384 = vmatpush1.msra.mxu0 %v1383
    %1385 = vmatprep.subr.mxu0 0.0
    %v1386 = vand.u32 %v969, 4294901760
    %v1387 = vsub.f32 %v969, %v1386
    %1388 = vmatpush1.msra.mxu0 %v1387
    %1389 = vmatprep.subr.mxu0 0.0
    %1390 = vmatpush1.msra.mxu0 0.0
    %1391 = vmatprep.subr.mxu0 0.0
    %1392 = vmatpush1.msra.mxu0 0.0
    %1393 = vmatprep.subr.mxu0 0.0
    %1394 = vmatpush1.msra.mxu0 0.0
    %1395 = vmatprep.subr.mxu0 0.0
    %1396 = vmatpush1.msra.mxu0 0.0
    %1397 = vmatprep.subr.mxu0 0.0
    %1398 = vmatpush1.msra.mxu0 0.0
    %1399 = vmatprep.subr.mxu0 0.0
    %1400 = vmatpush1.msra.mxu0 0.0
    %1401 = vmatprep.subr.mxu0 0.0
    %1402 = vmatpush1.msra.mxu0 0.0
    %1403 = vmatprep.subr.mxu0 0.0
    %1404 = vmatpush1.msra.mxu0 0.0
    %1405 = vmatprep.subr.mxu0 0.0
    %1406 = vmatpush1.msra.mxu0 0.0
    %1407 = vmatprep.subr.mxu0 0.0
    %1408 = vmatpush1.msra.mxu0 0.0
    %1409 = vmatprep.subr.mxu0 0.0
    %1410 = vmatpush1.msra.mxu0 0.0
    %1411 = vmatprep.subr.mxu0 0.0
    %1412 = vmatpush1.msra.mxu0 0.0
    %1413 = vmatprep.subr.mxu0 0.0
    %1414 = vmatpush1.msra.mxu0 0.0
    %1415 = vmatprep.subr.mxu0 0.0
    %1416 = vmatpush1.msra.mxu0 0.0
    %1417 = vmatprep.subr.mxu0 0.0
    %1418 = vmatpush1.msra.mxu0 0.0
    %1419 = vmatprep.subr.mxu0 0.0
    %1420 = vmatpush1.msra.mxu0 0.0
    %1421 = vmatprep.subr.mxu0 0.0
    %1422 = vmatpush1.msra.mxu0 0.0
    %1423 = vmatprep.subr.mxu0 0.0
    %1424 = vmatpush1.msra.mxu0 0.0
    %1425 = vmatprep.subr.mxu0 0.0
    %1426 = vmatpush1.msra.mxu0 0.0
    %1427 = vmatprep.subr.mxu0 0.0
    %1428 = vmatpush1.msra.mxu0 0.0
    %1429 = vmatprep.subr.mxu0 0.0
    %1430 = vmatpush1.msra.mxu0 0.0
    %1431 = vmatprep.subr.mxu0 0.0
    %1432 = vmatpush1.msra.mxu0 0.0
    %1433 = vmatprep.subr.mxu0 0.0
    %1434 = vmatpush1.msra.mxu0 0.0
    %1435 = vmatprep.subr.mxu0 0.0
    %1436 = vmatpush1.msra.mxu0 0.0
    %1437 = vmatprep.mubr.f32.mxu0 0.0
    %v1438 = vand.u32 %v1028, 4294901760
    %v1439 = vsub.f32 %v1028, %v1438
    %1440 = vmatmul.mubr.f32.gmra.mrb[0].mxu0 %v1439
    %v1441 = vpop.f32.mrb[0].mxu0
    %v1442 = vadd.f32 %v1312, %v1441
    %v1443 = vpop.f32.mrb[0].mxu0
    %1444 = vmatprep.mubr.f32.mxu0 0.0
    %v1445 = vand.u32 %v1031, 4294901760
    %v1446 = vsub.f32 %v1031, %v1445
    %1447 = vmatmul.mubr.f32.gmra.mrb[0].mxu0 %v1446
    %v1448 = vpop.f32.mrb[0].mxu0
    %v1449 = vadd.f32 %v1318, %v1448
    %v1450 = vpop.f32.mrb[0].mxu0
    %1451 = vmatprep.mubr.f32.mxu0 0.0
    %v1452 = vand.u32 %v1034, 4294901760
    %v1453 = vsub.f32 %v1034, %v1452
    %1454 = vmatmul.mubr.f32.gmra.mrb[0].mxu0 %v1453
    %v1455 = vpop.f32.mrb[0].mxu0
    %v1456 = vadd.f32 %v1324, %v1455
    %v1457 = vpop.f32.mrb[0].mxu0
    %1458 = vmatprep.mubr.f32.mxu0 0.0
    %v1459 = vand.u32 %v1037, 4294901760
    %v1460 = vsub.f32 %v1037, %v1459
    %1461 = vmatmul.mubr.f32.gmra.mrb[0].mxu0 %v1460
    %v1462 = vpop.f32.mrb[0].mxu0
    %v1463 = vadd.f32 %v1330, %v1462
    %v1464 = vpop.f32.mrb[0].mxu0
    %1465 = vmatprep.mubr.f32.mxu0 0.0
    %v1466 = vand.u32 %v1040, 4294901760
    %v1467 = vsub.f32 %v1040, %v1466
    %1468 = vmatmul.mubr.f32.gmra.mrb[0].mxu0 %v1467
    %v1469 = vpop.f32.mrb[0].mxu0
    %v1470 = vadd.f32 %v1336, %v1469
    %v1471 = vpop.f32.mrb[0].mxu0
    %1472 = vmatprep.mubr.f32.mxu0 0.0
    %v1473 = vand.u32 %v1043, 4294901760
    %v1474 = vsub.f32 %v1043, %v1473
    %1475 = vmatmul.mubr.f32.gmra.mrb[0].mxu0 %v1474
    %v1476 = vpop.f32.mrb[0].mxu0
    %v1477 = vadd.f32 %v1342, %v1476
    %v1478 = vpop.f32.mrb[0].mxu0
    %1479 = vmatprep.mubr.f32.mxu0 0.0
    %v1480 = vand.u32 %v1046, 4294901760
    %v1481 = vsub.f32 %v1046, %v1480
    %1482 = vmatmul.mubr.f32.gmra.mrb[0].mxu0 %v1481
    %v1483 = vpop.f32.mrb[0].mxu0
    %v1484 = vadd.f32 %v1348, %v1483
    %v1485 = vpop.f32.mrb[0].mxu0
    %1486 = vmatprep.mubr.f32.mxu0 0.0
    %v1487 = vand.u32 %v1049, 4294901760
    %v1488 = vsub.f32 %v1049, %v1487
    %1489 = vmatmul.mubr.f32.gmra.mrb[0].mxu0 %v1488
    %v1490 = vpop.f32.mrb[0].mxu0
    %v1491 = vadd.f32 %v1354, %v1490
    %v1492 = vpop.f32.mrb[0].mxu0
    %1493 = vdwg.mxu0
    %1494 = vmatprep.subr.mxu0 0.0
    %v1495 = vand.u32 %v962, 4294901760
    %1496 = vmatpush1.msra.mxu0 %v1495
    %1497 = vmatprep.subr.mxu0 0.0
    %v1498 = vand.u32 %v963, 4294901760
    %1499 = vmatpush1.msra.mxu0 %v1498
    %1500 = vmatprep.subr.mxu0 0.0
    %v1501 = vand.u32 %v964, 4294901760
    %1502 = vmatpush1.msra.mxu0 %v1501
    %1503 = vmatprep.subr.mxu0 0.0
    %v1504 = vand.u32 %v965, 4294901760
    %1505 = vmatpush1.msra.mxu0 %v1504
    %1506 = vmatprep.subr.mxu0 0.0
    %v1507 = vand.u32 %v966, 4294901760
    %1508 = vmatpush1.msra.mxu0 %v1507
    %1509 = vmatprep.subr.mxu0 0.0
    %v1510 = vand.u32 %v967, 4294901760
    %1511 = vmatpush1.msra.mxu0 %v1510
    %1512 = vmatprep.subr.mxu0 0.0
    %v1513 = vand.u32 %v968, 4294901760
    %1514 = vmatpush1.msra.mxu0 %v1513
    %1515 = vmatprep.subr.mxu0 0.0
    %v1516 = vand.u32 %v969, 4294901760
    %1517 = vmatpush1.msra.mxu0 %v1516
    %1518 = vmatprep.subr.mxu0 0.0
    %1519 = vmatpush1.msra.mxu0 0.0
    %1520 = vmatprep.subr.mxu0 0.0
    %1521 = vmatpush1.msra.mxu0 0.0
    %1522 = vmatprep.subr.mxu0 0.0
    %1523 = vmatpush1.msra.mxu0 0.0
    %1524 = vmatprep.subr.mxu0 0.0
    %1525 = vmatpush1.msra.mxu0 0.0
    %1526 = vmatprep.subr.mxu0 0.0
    %1527 = vmatpush1.msra.mxu0 0.0
    %1528 = vmatprep.subr.mxu0 0.0
    %1529 = vmatpush1.msra.mxu0 0.0
    %1530 = vmatprep.subr.mxu0 0.0
    %1531 = vmatpush1.msra.mxu0 0.0
    %1532 = vmatprep.subr.mxu0 0.0
    %1533 = vmatpush1.msra.mxu0 0.0
    %1534 = vmatprep.subr.mxu0 0.0
    %1535 = vmatpush1.msra.mxu0 0.0
    %1536 = vmatprep.subr.mxu0 0.0
    %1537 = vmatpush1.msra.mxu0 0.0
    %1538 = vmatprep.subr.mxu0 0.0
    %1539 = vmatpush1.msra.mxu0 0.0
    %1540 = vmatprep.subr.mxu0 0.0
    %1541 = vmatpush1.msra.mxu0 0.0
    %1542 = vmatprep.subr.mxu0 0.0
    %1543 = vmatpush1.msra.mxu0 0.0
    %1544 = vmatprep.subr.mxu0 0.0
    %1545 = vmatpush1.msra.mxu0 0.0
    %1546 = vmatprep.subr.mxu0 0.0
    %1547 = vmatpush1.msra.mxu0 0.0
    %1548 = vmatprep.subr.mxu0 0.0
    %1549 = vmatpush1.msra.mxu0 0.0
    %1550 = vmatprep.subr.mxu0 0.0
    %1551 = vmatpush1.msra.mxu0 0.0
    %1552 = vmatprep.subr.mxu0 0.0
    %1553 = vmatpush1.msra.mxu0 0.0
    %1554 = vmatprep.subr.mxu0 0.0
    %1555 = vmatpush1.msra.mxu0 0.0
    %1556 = vmatprep.subr.mxu0 0.0
    %1557 = vmatpush1.msra.mxu0 0.0
    %1558 = vmatprep.subr.mxu0 0.0
    %1559 = vmatpush1.msra.mxu0 0.0
    %1560 = vmatprep.subr.mxu0 0.0
    %1561 = vmatpush1.msra.mxu0 0.0
    %1562 = vmatprep.subr.mxu0 0.0
    %1563 = vmatpush1.msra.mxu0 0.0
    %1564 = vmatprep.subr.mxu0 0.0
    %1565 = vmatpush1.msra.mxu0 0.0
    %1566 = vmatprep.mubr.f32.mxu0 0.0
    %v1567 = vand.u32 %v1028, 4294901760
    %v1568 = vsub.f32 %v1028, %v1567
    %v1569 = vand.u32 %v1568, 4294901760
    %1570 = vmatmul.mubr.f32.gmra.mrb[0].mxu0 %v1569
    %v1571 = vpop.f32.mrb[0].mxu0
    %v1572 = vadd.f32 %v1442, %v1571
    %v1573 = vpop.f32.mrb[0].mxu0
    %1574 = vmatprep.mubr.f32.mxu0 0.0
    %v1575 = vand.u32 %v1031, 4294901760
    %v1576 = vsub.f32 %v1031, %v1575
    %v1577 = vand.u32 %v1576, 4294901760
    %1578 = vmatmul.mubr.f32.gmra.mrb[0].mxu0 %v1577
    %v1579 = vpop.f32.mrb[0].mxu0
    %v1580 = vadd.f32 %v1449, %v1579
    %v1581 = vpop.f32.mrb[0].mxu0
    %1582 = vmatprep.mubr.f32.mxu0 0.0
    %v1583 = vand.u32 %v1034, 4294901760
    %v1584 = vsub.f32 %v1034, %v1583
    %v1585 = vand.u32 %v1584, 4294901760
    %1586 = vmatmul.mubr.f32.gmra.mrb[0].mxu0 %v1585
    %v1587 = vpop.f32.mrb[0].mxu0
    %v1588 = vadd.f32 %v1456, %v1587
    %v1589 = vpop.f32.mrb[0].mxu0
    %1590 = vmatprep.mubr.f32.mxu0 0.0
    %v1591 = vand.u32 %v1037, 4294901760
    %v1592 = vsub.f32 %v1037, %v1591
    %v1593 = vand.u32 %v1592, 4294901760
    %1594 = vmatmul.mubr.f32.gmra.mrb[0].mxu0 %v1593
    %v1595 = vpop.f32.mrb[0].mxu0
    %v1596 = vadd.f32 %v1463, %v1595
    %v1597 = vpop.f32.mrb[0].mxu0
    %1598 = vmatprep.mubr.f32.mxu0 0.0
    %v1599 = vand.u32 %v1040, 4294901760
    %v1600 = vsub.f32 %v1040, %v1599
    %v1601 = vand.u32 %v1600, 4294901760
    %1602 = vmatmul.mubr.f32.gmra.mrb[0].mxu0 %v1601
    %v1603 = vpop.f32.mrb[0].mxu0
    %v1604 = vadd.f32 %v1470, %v1603
    %v1605 = vpop.f32.mrb[0].mxu0
    %1606 = vmatprep.mubr.f32.mxu0 0.0
    %v1607 = vand.u32 %v1043, 4294901760
    %v1608 = vsub.f32 %v1043, %v1607
    %v1609 = vand.u32 %v1608, 4294901760
    %1610 = vmatmul.mubr.f32.gmra.mrb[0].mxu0 %v1609
    %v1611 = vpop.f32.mrb[0].mxu0
    %v1612 = vadd.f32 %v1477, %v1611
    %v1613 = vpop.f32.mrb[0].mxu0
    %1614 = vmatprep.mubr.f32.mxu0 0.0
    %v1615 = vand.u32 %v1046, 4294901760
    %v1616 = vsub.f32 %v1046, %v1615
    %v1617 = vand.u32 %v1616, 4294901760
    %1618 = vmatmul.mubr.f32.gmra.mrb[0].mxu0 %v1617
    %v1619 = vpop.f32.mrb[0].mxu0
    %v1620 = vadd.f32 %v1484, %v1619
    %v1621 = vpop.f32.mrb[0].mxu0
    %1622 = vmatprep.mubr.f32.mxu0 0.0
    %v1623 = vand.u32 %v1049, 4294901760
    %v1624 = vsub.f32 %v1049, %v1623
    %v1625 = vand.u32 %v1624, 4294901760
    %1626 = vmatmul.mubr.f32.gmra.mrb[0].mxu0 %v1625
    %v1627 = vpop.f32.mrb[0].mxu0
    %v1628 = vadd.f32 %v1491, %v1627
    %v1629 = vpop.f32.mrb[0].mxu0
    %1630 = vdwg.mxu0
    %1631 = vmatprep.subr.mxu0 0.0
    %v1632 = vand.u32 %v962, 4294901760
    %v1633 = vsub.f32 %v962, %v1632
    %v1634 = vand.u32 %v1633, 4294901760
    %1635 = vmatpush1.msra.mxu0 %v1634
    %1636 = vmatprep.subr.mxu0 0.0
    %v1637 = vand.u32 %v963, 4294901760
    %v1638 = vsub.f32 %v963, %v1637
    %v1639 = vand.u32 %v1638, 4294901760
    %1640 = vmatpush1.msra.mxu0 %v1639
    %1641 = vmatprep.subr.mxu0 0.0
    %v1642 = vand.u32 %v964, 4294901760
    %v1643 = vsub.f32 %v964, %v1642
    %v1644 = vand.u32 %v1643, 4294901760
    %1645 = vmatpush1.msra.mxu0 %v1644
    %1646 = vmatprep.subr.mxu0 0.0
    %v1647 = vand.u32 %v965, 4294901760
    %v1648 = vsub.f32 %v965, %v1647
    %v1649 = vand.u32 %v1648, 4294901760
    %1650 = vmatpush1.msra.mxu0 %v1649
    %1651 = vmatprep.subr.mxu0 0.0
    %v1652 = vand.u32 %v966, 4294901760
    %v1653 = vsub.f32 %v966, %v1652
    %v1654 = vand.u32 %v1653, 4294901760
    %1655 = vmatpush1.msra.mxu0 %v1654
    %1656 = vmatprep.subr.mxu0 0.0
    %v1657 = vand.u32 %v967, 4294901760
    %v1658 = vsub.f32 %v967, %v1657
    %v1659 = vand.u32 %v1658, 4294901760
    %1660 = vmatpush1.msra.mxu0 %v1659
    %1661 = vmatprep.subr.mxu0 0.0
    %v1662 = vand.u32 %v968, 4294901760
    %v1663 = vsub.f32 %v968, %v1662
    %v1664 = vand.u32 %v1663, 4294901760
    %1665 = vmatpush1.msra.mxu0 %v1664
    %1666 = vmatprep.subr.mxu0 0.0
    %v1667 = vand.u32 %v969, 4294901760
    %v1668 = vsub.f32 %v969, %v1667
    %v1669 = vand.u32 %v1668, 4294901760
    %1670 = vmatpush1.msra.mxu0 %v1669
    %1671 = vmatprep.subr.mxu0 0.0
    %1672 = vmatpush1.msra.mxu0 0.0
    %1673 = vmatprep.subr.mxu0 0.0
    %1674 = vmatpush1.msra.mxu0 0.0
    %1675 = vmatprep.subr.mxu0 0.0
    %1676 = vmatpush1.msra.mxu0 0.0
    %1677 = vmatprep.subr.mxu0 0.0
    %1678 = vmatpush1.msra.mxu0 0.0
    %1679 = vmatprep.subr.mxu0 0.0
    %1680 = vmatpush1.msra.mxu0 0.0
    %1681 = vmatprep.subr.mxu0 0.0
    %1682 = vmatpush1.msra.mxu0 0.0
    %1683 = vmatprep.subr.mxu0 0.0
    %1684 = vmatpush1.msra.mxu0 0.0
    %1685 = vmatprep.subr.mxu0 0.0
    %1686 = vmatpush1.msra.mxu0 0.0
    %1687 = vmatprep.subr.mxu0 0.0
    %1688 = vmatpush1.msra.mxu0 0.0
    %1689 = vmatprep.subr.mxu0 0.0
    %1690 = vmatpush1.msra.mxu0 0.0
    %1691 = vmatprep.subr.mxu0 0.0
    %1692 = vmatpush1.msra.mxu0 0.0
    %1693 = vmatprep.subr.mxu0 0.0
    %1694 = vmatpush1.msra.mxu0 0.0
    %1695 = vmatprep.subr.mxu0 0.0
    %1696 = vmatpush1.msra.mxu0 0.0
    %1697 = vmatprep.subr.mxu0 0.0
    %1698 = vmatpush1.msra.mxu0 0.0
    %1699 = vmatprep.subr.mxu0 0.0
    %1700 = vmatpush1.msra.mxu0 0.0
    %1701 = vmatprep.subr.mxu0 0.0
    %1702 = vmatpush1.msra.mxu0 0.0
    %1703 = vmatprep.subr.mxu0 0.0
    %1704 = vmatpush1.msra.mxu0 0.0
    %1705 = vmatprep.subr.mxu0 0.0
    %1706 = vmatpush1.msra.mxu0 0.0
    %1707 = vmatprep.subr.mxu0 0.0
    %1708 = vmatpush1.msra.mxu0 0.0
    %1709 = vmatprep.subr.mxu0 0.0
    %1710 = vmatpush1.msra.mxu0 0.0
    %1711 = vmatprep.subr.mxu0 0.0
    %1712 = vmatpush1.msra.mxu0 0.0
    %1713 = vmatprep.subr.mxu0 0.0
    %1714 = vmatpush1.msra.mxu0 0.0
    %1715 = vmatprep.subr.mxu0 0.0
    %1716 = vmatpush1.msra.mxu0 0.0
    %1717 = vmatprep.subr.mxu0 0.0
    %1718 = vmatpush1.msra.mxu0 0.0
    %1719 = vmatprep.mubr.f32.mxu0 0.0
    %v1720 = vand.u32 %v1028, 4294901760
    %1721 = vmatmul.mubr.f32.gmra.mrb[0].mxu0 %v1720
    %v1722 = vpop.f32.mrb[0].mxu0
    %v1723 = vadd.f32 %v1572, %v1722
    %v1724 = vpop.f32.mrb[0].mxu0
    %1725 = vmatprep.mubr.f32.mxu0 0.0
    %v1726 = vand.u32 %v1031, 4294901760
    %1727 = vmatmul.mubr.f32.gmra.mrb[0].mxu0 %v1726
    %v1728 = vpop.f32.mrb[0].mxu0
    %v1729 = vadd.f32 %v1580, %v1728
    %v1730 = vpop.f32.mrb[0].mxu0
    %1731 = vmatprep.mubr.f32.mxu0 0.0
    %v1732 = vand.u32 %v1034, 4294901760
    %1733 = vmatmul.mubr.f32.gmra.mrb[0].mxu0 %v1732
    %v1734 = vpop.f32.mrb[0].mxu0
    %v1735 = vadd.f32 %v1588, %v1734
    %v1736 = vpop.f32.mrb[0].mxu0
    %1737 = vmatprep.mubr.f32.mxu0 0.0
    %v1738 = vand.u32 %v1037, 4294901760
    %1739 = vmatmul.mubr.f32.gmra.mrb[0].mxu0 %v1738
    %v1740 = vpop.f32.mrb[0].mxu0
    %v1741 = vadd.f32 %v1596, %v1740
    %v1742 = vpop.f32.mrb[0].mxu0
    %1743 = vmatprep.mubr.f32.mxu0 0.0
    %v1744 = vand.u32 %v1040, 4294901760
    %1745 = vmatmul.mubr.f32.gmra.mrb[0].mxu0 %v1744
    %v1746 = vpop.f32.mrb[0].mxu0
    %v1747 = vadd.f32 %v1604, %v1746
    %v1748 = vpop.f32.mrb[0].mxu0
    %1749 = vmatprep.mubr.f32.mxu0 0.0
    %v1750 = vand.u32 %v1043, 4294901760
    %1751 = vmatmul.mubr.f32.gmra.mrb[0].mxu0 %v1750
    %v1752 = vpop.f32.mrb[0].mxu0
    %v1753 = vadd.f32 %v1612, %v1752
    %v1754 = vpop.f32.mrb[0].mxu0
    %1755 = vmatprep.mubr.f32.mxu0 0.0
    %v1756 = vand.u32 %v1046, 4294901760
    %1757 = vmatmul.mubr.f32.gmra.mrb[0].mxu0 %v1756
    %v1758 = vpop.f32.mrb[0].mxu0
    %v1759 = vadd.f32 %v1620, %v1758
    %v1760 = vpop.f32.mrb[0].mxu0
    %1761 = vmatprep.mubr.f32.mxu0 0.0
    %v1762 = vand.u32 %v1049, 4294901760
    %1763 = vmatmul.mubr.f32.gmra.mrb[0].mxu0 %v1762
    %v1764 = vpop.f32.mrb[0].mxu0
    %v1765 = vadd.f32 %v1628, %v1764
    %v1766 = vpop.f32.mrb[0].mxu0
    %1767 = vdwg.mxu0
    %1768 = vmatprep.subr.mxu0 0.0
    %v1769 = vand.u32 %v962, 4294901760
    %1770 = vmatpush1.msra.mxu0 %v1769
    %1771 = vmatprep.subr.mxu0 0.0
    %v1772 = vand.u32 %v963, 4294901760
    %1773 = vmatpush1.msra.mxu0 %v1772
    %1774 = vmatprep.subr.mxu0 0.0
    %v1775 = vand.u32 %v964, 4294901760
    %1776 = vmatpush1.msra.mxu0 %v1775
    %1777 = vmatprep.subr.mxu0 0.0
    %v1778 = vand.u32 %v965, 4294901760
    %1779 = vmatpush1.msra.mxu0 %v1778
    %1780 = vmatprep.subr.mxu0 0.0
    %v1781 = vand.u32 %v966, 4294901760
    %1782 = vmatpush1.msra.mxu0 %v1781
    %1783 = vmatprep.subr.mxu0 0.0
    %v1784 = vand.u32 %v967, 4294901760
    %1785 = vmatpush1.msra.mxu0 %v1784
    %1786 = vmatprep.subr.mxu0 0.0
    %v1787 = vand.u32 %v968, 4294901760
    %1788 = vmatpush1.msra.mxu0 %v1787
    %1789 = vmatprep.subr.mxu0 0.0
    %v1790 = vand.u32 %v969, 4294901760
    %1791 = vmatpush1.msra.mxu0 %v1790
    %1792 = vmatprep.subr.mxu0 0.0
    %1793 = vmatpush1.msra.mxu0 0.0
    %1794 = vmatprep.subr.mxu0 0.0
    %1795 = vmatpush1.msra.mxu0 0.0
    %1796 = vmatprep.subr.mxu0 0.0
    %1797 = vmatpush1.msra.mxu0 0.0
    %1798 = vmatprep.subr.mxu0 0.0
    %1799 = vmatpush1.msra.mxu0 0.0
    %1800 = vmatprep.subr.mxu0 0.0
    %1801 = vmatpush1.msra.mxu0 0.0
    %1802 = vmatprep.subr.mxu0 0.0
    %1803 = vmatpush1.msra.mxu0 0.0
    %1804 = vmatprep.subr.mxu0 0.0
    %1805 = vmatpush1.msra.mxu0 0.0
    %1806 = vmatprep.subr.mxu0 0.0
    %1807 = vmatpush1.msra.mxu0 0.0
    %1808 = vmatprep.subr.mxu0 0.0
    %1809 = vmatpush1.msra.mxu0 0.0
    %1810 = vmatprep.subr.mxu0 0.0
    %1811 = vmatpush1.msra.mxu0 0.0
    %1812 = vmatprep.subr.mxu0 0.0
    %1813 = vmatpush1.msra.mxu0 0.0
    %1814 = vmatprep.subr.mxu0 0.0
    %1815 = vmatpush1.msra.mxu0 0.0
    %1816 = vmatprep.subr.mxu0 0.0
    %1817 = vmatpush1.msra.mxu0 0.0
    %1818 = vmatprep.subr.mxu0 0.0
    %1819 = vmatpush1.msra.mxu0 0.0
    %1820 = vmatprep.subr.mxu0 0.0
    %1821 = vmatpush1.msra.mxu0 0.0
    %1822 = vmatprep.subr.mxu0 0.0
    %1823 = vmatpush1.msra.mxu0 0.0
    %1824 = vmatprep.subr.mxu0 0.0
    %1825 = vmatpush1.msra.mxu0 0.0
    %1826 = vmatprep.subr.mxu0 0.0
    %1827 = vmatpush1.msra.mxu0 0.0
    %1828 = vmatprep.subr.mxu0 0.0
    %1829 = vmatpush1.msra.mxu0 0.0
    %1830 = vmatprep.subr.mxu0 0.0
    %1831 = vmatpush1.msra.mxu0 0.0
    %1832 = vmatprep.subr.mxu0 0.0
    %1833 = vmatpush1.msra.mxu0 0.0
    %1834 = vmatprep.subr.mxu0 0.0
    %1835 = vmatpush1.msra.mxu0 0.0
    %1836 = vmatprep.subr.mxu0 0.0
    %1837 = vmatpush1.msra.mxu0 0.0
    %1838 = vmatprep.subr.mxu0 0.0
    %1839 = vmatpush1.msra.mxu0 0.0
    %1840 = vmatprep.mubr.f32.mxu0 0.0
    %v1841 = vand.u32 %v1028, 4294901760
    %1842 = vmatmul.mubr.f32.gmra.mrb[0].mxu0 %v1841
    %v1843 = vpop.f32.mrb[0].mxu0
    %v1844 = vadd.f32 %v1723, %v1843
    %v1845 = vpop.f32.mrb[0].mxu0
    %1846 = vmatprep.mubr.f32.mxu0 0.0
    %v1847 = vand.u32 %v1031, 4294901760
    %1848 = vmatmul.mubr.f32.gmra.mrb[0].mxu0 %v1847
    %v1849 = vpop.f32.mrb[0].mxu0
    %v1850 = vadd.f32 %v1729, %v1849
    %v1851 = vpop.f32.mrb[0].mxu0
    %1852 = vmatprep.mubr.f32.mxu0 0.0
    %v1853 = vand.u32 %v1034, 4294901760
    %1854 = vmatmul.mubr.f32.gmra.mrb[0].mxu0 %v1853
    %v1855 = vpop.f32.mrb[0].mxu0
    %v1856 = vadd.f32 %v1735, %v1855
    %v1857 = vpop.f32.mrb[0].mxu0
    %1858 = vmatprep.mubr.f32.mxu0 0.0
    %v1859 = vand.u32 %v1037, 4294901760
    %1860 = vmatmul.mubr.f32.gmra.mrb[0].mxu0 %v1859
    %v1861 = vpop.f32.mrb[0].mxu0
    %v1862 = vadd.f32 %v1741, %v1861
    %v1863 = vpop.f32.mrb[0].mxu0
    %1864 = vmatprep.mubr.f32.mxu0 0.0
    %v1865 = vand.u32 %v1040, 4294901760
    %1866 = vmatmul.mubr.f32.gmra.mrb[0].mxu0 %v1865
    %v1867 = vpop.f32.mrb[0].mxu0
    %v1868 = vadd.f32 %v1747, %v1867
    %v1869 = vpop.f32.mrb[0].mxu0
    %1870 = vmatprep.mubr.f32.mxu0 0.0
    %v1871 = vand.u32 %v1043, 4294901760
    %1872 = vmatmul.mubr.f32.gmra.mrb[0].mxu0 %v1871
    %v1873 = vpop.f32.mrb[0].mxu0
    %v1874 = vadd.f32 %v1753, %v1873
    %v1875 = vpop.f32.mrb[0].mxu0
    %1876 = vmatprep.mubr.f32.mxu0 0.0
    %v1877 = vand.u32 %v1046, 4294901760
    %1878 = vmatmul.mubr.f32.gmra.mrb[0].mxu0 %v1877
    %v1879 = vpop.f32.mrb[0].mxu0
    %v1880 = vadd.f32 %v1759, %v1879
    %v1881 = vpop.f32.mrb[0].mxu0
    %1882 = vmatprep.mubr.f32.mxu0 0.0
    %v1883 = vand.u32 %v1049, 4294901760
    %1884 = vmatmul.mubr.f32.gmra.mrb[0].mxu0 %v1883
    %v1885 = vpop.f32.mrb[0].mxu0
    %v1886 = vadd.f32 %v1765, %v1885
    %v1887 = vpop.f32.mrb[0].mxu0
    %1888 = vdwg.mxu0
    %v1889 = vtanh.pop %v1844
    %v1890 = vtanh.pop %v1850
    %v1891 = vtanh.pop %v1856
    %v1892 = vtanh.pop %v1862
    %v1893 = vtanh.pop %v1868
    %v1894 = vtanh.pop %v1874
    %v1895 = vtanh.pop %v1880
    %v1896 = vtanh.pop %v1886
    %v1897 = vld [vmem:[%s5] sm:$0x1]
    %s1898 = sld [smem:[#allocation2]]
    %v1899 = vstv %s1898
    %v1901 = vsel %vm1026, %v1897, 0
    %1903 = vmatprep.subr.mxu0 0.0
    %v1904 = vand.u32 %v1889, 4294901760
    %1905 = vmatpush1.msra.mxu0 %v1904
    %1906 = vmatprep.subr.mxu0 0.0
    %v1907 = vand.u32 %v1890, 4294901760
    %1908 = vmatpush1.msra.mxu0 %v1907
    %1909 = vmatprep.subr.mxu0 0.0
    %v1910 = vand.u32 %v1891, 4294901760
    %1911 = vmatpush1.msra.mxu0 %v1910
    %1912 = vmatprep.subr.mxu0 0.0
    %v1913 = vand.u32 %v1892, 4294901760
    %1914 = vmatpush1.msra.mxu0 %v1913
    %1915 = vmatprep.subr.mxu0 0.0
    %v1916 = vand.u32 %v1893, 4294901760
    %1917 = vmatpush1.msra.mxu0 %v1916
    %1918 = vmatprep.subr.mxu0 0.0
    %v1919 = vand.u32 %v1894, 4294901760
    %1920 = vmatpush1.msra.mxu0 %v1919
    %1921 = vmatprep.subr.mxu0 0.0
    %v1922 = vand.u32 %v1895, 4294901760
    %1923 = vmatpush1.msra.mxu0 %v1922
    %1924 = vmatprep.subr.mxu0 0.0
    %v1925 = vand.u32 %v1896, 4294901760
    %1926 = vmatpush1.msra.mxu0 %v1925
    %1927 = vmatprep.subr.mxu0 0.0
    %1928 = vmatpush1.msra.mxu0 0.0
    %1929 = vmatprep.subr.mxu0 0.0
    %1930 = vmatpush1.msra.mxu0 0.0
    %1931 = vmatprep.subr.mxu0 0.0
    %1932 = vmatpush1.msra.mxu0 0.0
    %1933 = vmatprep.subr.mxu0 0.0
    %1934 = vmatpush1.msra.mxu0 0.0
    %1935 = vmatprep.subr.mxu0 0.0
    %1936 = vmatpush1.msra.mxu0 0.0
    %1937 = vmatprep.subr.mxu0 0.0
    %1938 = vmatpush1.msra.mxu0 0.0
    %1939 = vmatprep.subr.mxu0 0.0
    %1940 = vmatpush1.msra.mxu0 0.0
    %1941 = vmatprep.subr.mxu0 0.0
    %1942 = vmatpush1.msra.mxu0 0.0
    %1943 = vmatprep.subr.mxu0 0.0
    %1944 = vmatpush1.msra.mxu0 0.0
    %1945 = vmatprep.subr.mxu0 0.0
    %1946 = vmatpush1.msra.mxu0 0.0
    %1947 = vmatprep.subr.mxu0 0.0
    %1948 = vmatpush1.msra.mxu0 0.0
    %1949 = vmatprep.subr.mxu0 0.0
    %1950 = vmatpush1.msra.mxu0 0.0
    %1951 = vmatprep.subr.mxu0 0.0
    %1952 = vmatpush1.msra.mxu0 0.0
    %1953 = vmatprep.subr.mxu0 0.0
    %1954 = vmatpush1.msra.mxu0 0.0
    %1955 = vmatprep.subr.mxu0 0.0
    %1956 = vmatpush1.msra.mxu0 0.0
    %1957 = vmatprep.subr.mxu0 0.0
    %1958 = vmatpush1.msra.mxu0 0.0
    %1959 = vmatprep.subr.mxu0 0.0
    %1960 = vmatpush1.msra.mxu0 0.0
    %1961 = vmatprep.subr.mxu0 0.0
    %1962 = vmatpush1.msra.mxu0 0.0
    %1963 = vmatprep.subr.mxu0 0.0
    %1964 = vmatpush1.msra.mxu0 0.0
    %1965 = vmatprep.subr.mxu0 0.0
    %1966 = vmatpush1.msra.mxu0 0.0
    %1967 = vmatprep.subr.mxu0 0.0
    %1968 = vmatpush1.msra.mxu0 0.0
    %1969 = vmatprep.subr.mxu0 0.0
    %1970 = vmatpush1.msra.mxu0 0.0
    %1971 = vmatprep.subr.mxu0 0.0
    %1972 = vmatpush1.msra.mxu0 0.0
    %1973 = vmatprep.subr.mxu0 0.0
    %1974 = vmatpush1.msra.mxu0 0.0
    %1975 = vmatprep.mubr.f32.mxu0 0.0
    %v1976 = vand.u32 %v1901, 4294901760
    %v1977 = vsub.f32 %v1901, %v1976
    %v1978 = vand.u32 %v1977, 4294901760
    %v1979 = vsub.f32 %v1977, %v1978
    %v1980 = vand.u32 %v1979, 4294901760
    %1981 = vmatmul.mubr.f32.gmra.mrb[0].mxu0 %v1980
    %v1982 = vpop.f32.mrb[0].mxu0
    %v1983 = vadd.f32 %v1899, %v1982
    %v1984 = vpop.f32.mrb[0].mxu0
    %1985 = vdwg.mxu0
    %1986 = vmatprep.subr.mxu0 0.0
    %v1987 = vand.u32 %v1889, 4294901760
    %v1988 = vsub.f32 %v1889, %v1987
    %v1989 = vand.u32 %v1988, 4294901760
    %v1990 = vsub.f32 %v1988, %v1989
    %v1991 = vand.u32 %v1990, 4294901760
    %1992 = vmatpush1.msra.mxu0 %v1991
    %1993 = vmatprep.subr.mxu0 0.0
    %v1994 = vand.u32 %v1890, 4294901760
    %v1995 = vsub.f32 %v1890, %v1994
    %v1996 = vand.u32 %v1995, 4294901760
    %v1997 = vsub.f32 %v1995, %v1996
    %v1998 = vand.u32 %v1997, 4294901760
    %1999 = vmatpush1.msra.mxu0 %v1998
    %2000 = vmatprep.subr.mxu0 0.0
    %v2001 = vand.u32 %v1891, 4294901760
    %v2002 = vsub.f32 %v1891, %v2001
    %v2003 = vand.u32 %v2002, 4294901760
    %v2004 = vsub.f32 %v2002, %v2003
    %v2005 = vand.u32 %v2004, 4294901760
    %2006 = vmatpush1.msra.mxu0 %v2005
    %2007 = vmatprep.subr.mxu0 0.0
    %v2008 = vand.u32 %v1892, 4294901760
    %v2009 = vsub.f32 %v1892, %v2008
    %v2010 = vand.u32 %v2009, 4294901760
    %v2011 = vsub.f32 %v2009, %v2010
    %v2012 = vand.u32 %v2011, 4294901760
    %2013 = vmatpush1.msra.mxu0 %v2012
    %2014 = vmatprep.subr.mxu0 0.0
    %v2015 = vand.u32 %v1893, 4294901760
    %v2016 = vsub.f32 %v1893, %v2015
    %v2017 = vand.u32 %v2016, 4294901760
    %v2018 = vsub.f32 %v2016, %v2017
    %v2019 = vand.u32 %v2018, 4294901760
    %2020 = vmatpush1.msra.mxu0 %v2019
    %2021 = vmatprep.subr.mxu0 0.0
    %v2022 = vand.u32 %v1894, 4294901760
    %v2023 = vsub.f32 %v1894, %v2022
    %v2024 = vand.u32 %v2023, 4294901760
    %v2025 = vsub.f32 %v2023, %v2024
    %v2026 = vand.u32 %v2025, 4294901760
    %2027 = vmatpush1.msra.mxu0 %v2026
    %2028 = vmatprep.subr.mxu0 0.0
    %v2029 = vand.u32 %v1895, 4294901760
    %v2030 = vsub.f32 %v1895, %v2029
    %v2031 = vand.u32 %v2030, 4294901760
    %v2032 = vsub.f32 %v2030, %v2031
    %v2033 = vand.u32 %v2032, 4294901760
    %2034 = vmatpush1.msra.mxu0 %v2033
    %2035 = vmatprep.subr.mxu0 0.0
    %v2036 = vand.u32 %v1896, 4294901760
    %v2037 = vsub.f32 %v1896, %v2036
    %v2038 = vand.u32 %v2037, 4294901760
    %v2039 = vsub.f32 %v2037, %v2038
    %v2040 = vand.u32 %v2039, 4294901760
    %2041 = vmatpush1.msra.mxu0 %v2040
    %2042 = vmatprep.subr.mxu0 0.0
    %2043 = vmatpush1.msra.mxu0 0.0
    %2044 = vmatprep.subr.mxu0 0.0
    %2045 = vmatpush1.msra.mxu0 0.0
    %2046 = vmatprep.subr.mxu0 0.0
    %2047 = vmatpush1.msra.mxu0 0.0
    %2048 = vmatprep.subr.mxu0 0.0
    %2049 = vmatpush1.msra.mxu0 0.0
    %2050 = vmatprep.subr.mxu0 0.0
    %2051 = vmatpush1.msra.mxu0 0.0
    %2052 = vmatprep.subr.mxu0 0.0
    %2053 = vmatpush1.msra.mxu0 0.0
    %2054 = vmatprep.subr.mxu0 0.0
    %2055 = vmatpush1.msra.mxu0 0.0
    %2056 = vmatprep.subr.mxu0 0.0
    %2057 = vmatpush1.msra.mxu0 0.0
    %2058 = vmatprep.subr.mxu0 0.0
    %2059 = vmatpush1.msra.mxu0 0.0
    %2060 = vmatprep.subr.mxu0 0.0
    %2061 = vmatpush1.msra.mxu0 0.0
    %2062 = vmatprep.subr.mxu0 0.0
    %2063 = vmatpush1.msra.mxu0 0.0
    %2064 = vmatprep.subr.mxu0 0.0
    %2065 = vmatpush1.msra.mxu0 0.0
    %2066 = vmatprep.subr.mxu0 0.0
    %2067 = vmatpush1.msra.mxu0 0.0
    %2068 = vmatprep.subr.mxu0 0.0
    %2069 = vmatpush1.msra.mxu0 0.0
    %2070 = vmatprep.subr.mxu0 0.0
    %2071 = vmatpush1.msra.mxu0 0.0
    %2072 = vmatprep.subr.mxu0 0.0
    %2073 = vmatpush1.msra.mxu0 0.0
    %2074 = vmatprep.subr.mxu0 0.0
    %2075 = vmatpush1.msra.mxu0 0.0
    %2076 = vmatprep.subr.mxu0 0.0
    %2077 = vmatpush1.msra.mxu0 0.0
    %2078 = vmatprep.subr.mxu0 0.0
    %2079 = vmatpush1.msra.mxu0 0.0
    %2080 = vmatprep.subr.mxu0 0.0
    %2081 = vmatpush1.msra.mxu0 0.0
    %2082 = vmatprep.subr.mxu0 0.0
    %2083 = vmatpush1.msra.mxu0 0.0
    %2084 = vmatprep.subr.mxu0 0.0
    %2085 = vmatpush1.msra.mxu0 0.0
    %2086 = vmatprep.subr.mxu0 0.0
    %2087 = vmatpush1.msra.mxu0 0.0
    %2088 = vmatprep.subr.mxu0 0.0
    %2089 = vmatpush1.msra.mxu0 0.0
    %2090 = vmatprep.mubr.f32.mxu0 0.0
    %v2091 = vand.u32 %v1901, 4294901760
    %2092 = vmatmul.mubr.f32.gmra.mrb[0].mxu0 %v2091
    %v2093 = vpop.f32.mrb[0].mxu0
    %v2094 = vadd.f32 %v1983, %v2093
    %v2095 = vpop.f32.mrb[0].mxu0
    %2096 = vdwg.mxu0
    %2097 = vmatprep.subr.mxu0 0.0
    %v2098 = vand.u32 %v1889, 4294901760
    %v2099 = vsub.f32 %v1889, %v2098
    %2100 = vmatpush1.msra.mxu0 %v2099
    %2101 = vmatprep.subr.mxu0 0.0
    %v2102 = vand.u32 %v1890, 4294901760
    %v2103 = vsub.f32 %v1890, %v2102
    %2104 = vmatpush1.msra.mxu0 %v2103
    %2105 = vmatprep.subr.mxu0 0.0
    %v2106 = vand.u32 %v1891, 4294901760
    %v2107 = vsub.f32 %v1891, %v2106
    %2108 = vmatpush1.msra.mxu0 %v2107
    %2109 = vmatprep.subr.mxu0 0.0
    %v2110 = vand.u32 %v1892, 4294901760
    %v2111 = vsub.f32 %v1892, %v2110
    %2112 = vmatpush1.msra.mxu0 %v2111
    %2113 = vmatprep.subr.mxu0 0.0
    %v2114 = vand.u32 %v1893, 4294901760
    %v2115 = vsub.f32 %v1893, %v2114
    %2116 = vmatpush1.msra.mxu0 %v2115
    %2117 = vmatprep.subr.mxu0 0.0
    %v2118 = vand.u32 %v1894, 4294901760
    %v2119 = vsub.f32 %v1894, %v2118
    %2120 = vmatpush1.msra.mxu0 %v2119
    %2121 = vmatprep.subr.mxu0 0.0
    %v2122 = vand.u32 %v1895, 4294901760
    %v2123 = vsub.f32 %v1895, %v2122
    %2124 = vmatpush1.msra.mxu0 %v2123
    %2125 = vmatprep.subr.mxu0 0.0
    %v2126 = vand.u32 %v1896, 4294901760
    %v2127 = vsub.f32 %v1896, %v2126
    %2128 = vmatpush1.msra.mxu0 %v2127
    %2129 = vmatprep.subr.mxu0 0.0
    %2130 = vmatpush1.msra.mxu0 0.0
    %2131 = vmatprep.subr.mxu0 0.0
    %2132 = vmatpush1.msra.mxu0 0.0
    %2133 = vmatprep.subr.mxu0 0.0
    %2134 = vmatpush1.msra.mxu0 0.0
    %2135 = vmatprep.subr.mxu0 0.0
    %2136 = vmatpush1.msra.mxu0 0.0
    %2137 = vmatprep.subr.mxu0 0.0
    %2138 = vmatpush1.msra.mxu0 0.0
    %2139 = vmatprep.subr.mxu0 0.0
    %2140 = vmatpush1.msra.mxu0 0.0
    %2141 = vmatprep.subr.mxu0 0.0
    %2142 = vmatpush1.msra.mxu0 0.0
    %2143 = vmatprep.subr.mxu0 0.0
    %2144 = vmatpush1.msra.mxu0 0.0
    %2145 = vmatprep.subr.mxu0 0.0
    %2146 = vmatpush1.msra.mxu0 0.0
    %2147 = vmatprep.subr.mxu0 0.0
    %2148 = vmatpush1.msra.mxu0 0.0
    %2149 = vmatprep.subr.mxu0 0.0
    %2150 = vmatpush1.msra.mxu0 0.0
    %2151 = vmatprep.subr.mxu0 0.0
    %2152 = vmatpush1.msra.mxu0 0.0
    %2153 = vmatprep.subr.mxu0 0.0
    %2154 = vmatpush1.msra.mxu0 0.0
    %2155 = vmatprep.subr.mxu0 0.0
    %2156 = vmatpush1.msra.mxu0 0.0
    %2157 = vmatprep.subr.mxu0 0.0
    %2158 = vmatpush1.msra.mxu0 0.0
    %2159 = vmatprep.subr.mxu0 0.0
    %2160 = vmatpush1.msra.mxu0 0.0
    %2161 = vmatprep.subr.mxu0 0.0
    %2162 = vmatpush1.msra.mxu0 0.0
    %2163 = vmatprep.subr.mxu0 0.0
    %2164 = vmatpush1.msra.mxu0 0.0
    %2165 = vmatprep.subr.mxu0 0.0
    %2166 = vmatpush1.msra.mxu0 0.0
    %2167 = vmatprep.subr.mxu0 0.0
    %2168 = vmatpush1.msra.mxu0 0.0
    %2169 = vmatprep.subr.mxu0 0.0
    %2170 = vmatpush1.msra.mxu0 0.0
    %2171 = vmatprep.subr.mxu0 0.0
    %2172 = vmatpush1.msra.mxu0 0.0
    %2173 = vmatprep.subr.mxu0 0.0
    %2174 = vmatpush1.msra.mxu0 0.0
    %2175 = vmatprep.subr.mxu0 0.0
    %2176 = vmatpush1.msra.mxu0 0.0
    %2177 = vmatprep.mubr.f32.mxu0 0.0
    %v2178 = vand.u32 %v1901, 4294901760
    %v2179 = vsub.f32 %v1901, %v2178
    %2180 = vmatmul.mubr.f32.gmra.mrb[0].mxu0 %v2179
    %v2181 = vpop.f32.mrb[0].mxu0
    %v2182 = vadd.f32 %v2094, %v2181
    %v2183 = vpop.f32.mrb[0].mxu0
    %2184 = vdwg.mxu0
    %2185 = vmatprep.subr.mxu0 0.0
    %v2186 = vand.u32 %v1889, 4294901760
    %2187 = vmatpush1.msra.mxu0 %v2186
    %2188 = vmatprep.subr.mxu0 0.0
    %v2189 = vand.u32 %v1890, 4294901760
    %2190 = vmatpush1.msra.mxu0 %v2189
    %2191 = vmatprep.subr.mxu0 0.0
    %v2192 = vand.u32 %v1891, 4294901760
    %2193 = vmatpush1.msra.mxu0 %v2192
    %2194 = vmatprep.subr.mxu0 0.0
    %v2195 = vand.u32 %v1892, 4294901760
    %2196 = vmatpush1.msra.mxu0 %v2195
    %2197 = vmatprep.subr.mxu0 0.0
    %v2198 = vand.u32 %v1893, 4294901760
    %2199 = vmatpush1.msra.mxu0 %v2198
    %2200 = vmatprep.subr.mxu0 0.0
    %v2201 = vand.u32 %v1894, 4294901760
    %2202 = vmatpush1.msra.mxu0 %v2201
    %2203 = vmatprep.subr.mxu0 0.0
    %v2204 = vand.u32 %v1895, 4294901760
    %2205 = vmatpush1.msra.mxu0 %v2204
    %2206 = vmatprep.subr.mxu0 0.0
    %v2207 = vand.u32 %v1896, 4294901760
    %2208 = vmatpush1.msra.mxu0 %v2207
    %2209 = vmatprep.subr.mxu0 0.0
    %2210 = vmatpush1.msra.mxu0 0.0
    %2211 = vmatprep.subr.mxu0 0.0
    %2212 = vmatpush1.msra.mxu0 0.0
    %2213 = vmatprep.subr.mxu0 0.0
    %2214 = vmatpush1.msra.mxu0 0.0
    %2215 = vmatprep.subr.mxu0 0.0
    %2216 = vmatpush1.msra.mxu0 0.0
    %2217 = vmatprep.subr.mxu0 0.0
    %2218 = vmatpush1.msra.mxu0 0.0
    %2219 = vmatprep.subr.mxu0 0.0
    %2220 = vmatpush1.msra.mxu0 0.0
    %2221 = vmatprep.subr.mxu0 0.0
    %2222 = vmatpush1.msra.mxu0 0.0
    %2223 = vmatprep.subr.mxu0 0.0
    %2224 = vmatpush1.msra.mxu0 0.0
    %2225 = vmatprep.subr.mxu0 0.0
    %2226 = vmatpush1.msra.mxu0 0.0
    %2227 = vmatprep.subr.mxu0 0.0
    %2228 = vmatpush1.msra.mxu0 0.0
    %2229 = vmatprep.subr.mxu0 0.0
    %2230 = vmatpush1.msra.mxu0 0.0
    %2231 = vmatprep.subr.mxu0 0.0
    %2232 = vmatpush1.msra.mxu0 0.0
    %2233 = vmatprep.subr.mxu0 0.0
    %2234 = vmatpush1.msra.mxu0 0.0
    %2235 = vmatprep.subr.mxu0 0.0
    %2236 = vmatpush1.msra.mxu0 0.0
    %2237 = vmatprep.subr.mxu0 0.0
    %2238 = vmatpush1.msra.mxu0 0.0
    %2239 = vmatprep.subr.mxu0 0.0
    %2240 = vmatpush1.msra.mxu0 0.0
    %2241 = vmatprep.subr.mxu0 0.0
    %2242 = vmatpush1.msra.mxu0 0.0
    %2243 = vmatprep.subr.mxu0 0.0
    %2244 = vmatpush1.msra.mxu0 0.0
    %2245 = vmatprep.subr.mxu0 0.0
    %2246 = vmatpush1.msra.mxu0 0.0
    %2247 = vmatprep.subr.mxu0 0.0
    %2248 = vmatpush1.msra.mxu0 0.0
    %2249 = vmatprep.subr.mxu0 0.0
    %2250 = vmatpush1.msra.mxu0 0.0
    %2251 = vmatprep.subr.mxu0 0.0
    %2252 = vmatpush1.msra.mxu0 0.0
    %2253 = vmatprep.subr.mxu0 0.0
    %2254 = vmatpush1.msra.mxu0 0.0
    %2255 = vmatprep.subr.mxu0 0.0
    %2256 = vmatpush1.msra.mxu0 0.0
    %2257 = vmatprep.mubr.f32.mxu0 0.0
    %v2258 = vand.u32 %v1901, 4294901760
    %v2259 = vsub.f32 %v1901, %v2258
    %v2260 = vand.u32 %v2259, 4294901760
    %2261 = vmatmul.mubr.f32.gmra.mrb[0].mxu0 %v2260
    %v2262 = vpop.f32.mrb[0].mxu0
    %v2263 = vadd.f32 %v2182, %v2262
    %v2264 = vpop.f32.mrb[0].mxu0
    %2265 = vdwg.mxu0
    %2266 = vmatprep.subr.mxu0 0.0
    %v2267 = vand.u32 %v1889, 4294901760
    %v2268 = vsub.f32 %v1889, %v2267
    %v2269 = vand.u32 %v2268, 4294901760
    %2270 = vmatpush1.msra.mxu0 %v2269
    %2271 = vmatprep.subr.mxu0 0.0
    %v2272 = vand.u32 %v1890, 4294901760
    %v2273 = vsub.f32 %v1890, %v2272
    %v2274 = vand.u32 %v2273, 4294901760
    %2275 = vmatpush1.msra.mxu0 %v2274
    %2276 = vmatprep.subr.mxu0 0.0
    %v2277 = vand.u32 %v1891, 4294901760
    %v2278 = vsub.f32 %v1891, %v2277
    %v2279 = vand.u32 %v2278, 4294901760
    %2280 = vmatpush1.msra.mxu0 %v2279
    %2281 = vmatprep.subr.mxu0 0.0
    %v2282 = vand.u32 %v1892, 4294901760
    %v2283 = vsub.f32 %v1892, %v2282
    %v2284 = vand.u32 %v2283, 4294901760
    %2285 = vmatpush1.msra.mxu0 %v2284
    %2286 = vmatprep.subr.mxu0 0.0
    %v2287 = vand.u32 %v1893, 4294901760
    %v2288 = vsub.f32 %v1893, %v2287
    %v2289 = vand.u32 %v2288, 4294901760
    %2290 = vmatpush1.msra.mxu0 %v2289
    %2291 = vmatprep.subr.mxu0 0.0
    %v2292 = vand.u32 %v1894, 4294901760
    %v2293 = vsub.f32 %v1894, %v2292
    %v2294 = vand.u32 %v2293, 4294901760
    %2295 = vmatpush1.msra.mxu0 %v2294
    %2296 = vmatprep.subr.mxu0 0.0
    %v2297 = vand.u32 %v1895, 4294901760
    %v2298 = vsub.f32 %v1895, %v2297
    %v2299 = vand.u32 %v2298, 4294901760
    %2300 = vmatpush1.msra.mxu0 %v2299
    %2301 = vmatprep.subr.mxu0 0.0
    %v2302 = vand.u32 %v1896, 4294901760
    %v2303 = vsub.f32 %v1896, %v2302
    %v2304 = vand.u32 %v2303, 4294901760
    %2305 = vmatpush1.msra.mxu0 %v2304
    %2306 = vmatprep.subr.mxu0 0.0
    %2307 = vmatpush1.msra.mxu0 0.0
    %2308 = vmatprep.subr.mxu0 0.0
    %2309 = vmatpush1.msra.mxu0 0.0
    %2310 = vmatprep.subr.mxu0 0.0
    %2311 = vmatpush1.msra.mxu0 0.0
    %2312 = vmatprep.subr.mxu0 0.0
    %2313 = vmatpush1.msra.mxu0 0.0
    %2314 = vmatprep.subr.mxu0 0.0
    %2315 = vmatpush1.msra.mxu0 0.0
    %2316 = vmatprep.subr.mxu0 0.0
    %2317 = vmatpush1.msra.mxu0 0.0
    %2318 = vmatprep.subr.mxu0 0.0
    %2319 = vmatpush1.msra.mxu0 0.0
    %2320 = vmatprep.subr.mxu0 0.0
    %2321 = vmatpush1.msra.mxu0 0.0
    %2322 = vmatprep.subr.mxu0 0.0
    %2323 = vmatpush1.msra.mxu0 0.0
    %2324 = vmatprep.subr.mxu0 0.0
    %2325 = vmatpush1.msra.mxu0 0.0
    %2326 = vmatprep.subr.mxu0 0.0
    %2327 = vmatpush1.msra.mxu0 0.0
    %2328 = vmatprep.subr.mxu0 0.0
    %2329 = vmatpush1.msra.mxu0 0.0
    %2330 = vmatprep.subr.mxu0 0.0
    %2331 = vmatpush1.msra.mxu0 0.0
    %2332 = vmatprep.subr.mxu0 0.0
    %2333 = vmatpush1.msra.mxu0 0.0
    %2334 = vmatprep.subr.mxu0 0.0
    %2335 = vmatpush1.msra.mxu0 0.0
    %2336 = vmatprep.subr.mxu0 0.0
    %2337 = vmatpush1.msra.mxu0 0.0
    %2338 = vmatprep.subr.mxu0 0.0
    %2339 = vmatpush1.msra.mxu0 0.0
    %2340 = vmatprep.subr.mxu0 0.0
    %2341 = vmatpush1.msra.mxu0 0.0
    %2342 = vmatprep.subr.mxu0 0.0
    %2343 = vmatpush1.msra.mxu0 0.0
    %2344 = vmatprep.subr.mxu0 0.0
    %2345 = vmatpush1.msra.mxu0 0.0
    %2346 = vmatprep.subr.mxu0 0.0
    %2347 = vmatpush1.msra.mxu0 0.0
    %2348 = vmatprep.subr.mxu0 0.0
    %2349 = vmatpush1.msra.mxu0 0.0
    %2350 = vmatprep.subr.mxu0 0.0
    %2351 = vmatpush1.msra.mxu0 0.0
    %2352 = vmatprep.subr.mxu0 0.0
    %2353 = vmatpush1.msra.mxu0 0.0
    %2354 = vmatprep.mubr.f32.mxu0 0.0
    %v2355 = vand.u32 %v1901, 4294901760
    %2356 = vmatmul.mubr.f32.gmra.mrb[0].mxu0 %v2355
    %v2357 = vpop.f32.mrb[0].mxu0
    %v2358 = vadd.f32 %v2263, %v2357
    %v2359 = vpop.f32.mrb[0].mxu0
    %2360 = vdwg.mxu0
    %2361 = vmatprep.subr.mxu0 0.0
    %v2362 = vand.u32 %v1889, 4294901760
    %2363 = vmatpush1.msra.mxu0 %v2362
    %2364 = vmatprep.subr.mxu0 0.0
    %v2365 = vand.u32 %v1890, 4294901760
    %2366 = vmatpush1.msra.mxu0 %v2365
    %2367 = vmatprep.subr.mxu0 0.0
    %v2368 = vand.u32 %v1891, 4294901760
    %2369 = vmatpush1.msra.mxu0 %v2368
    %2370 = vmatprep.subr.mxu0 0.0
    %v2371 = vand.u32 %v1892, 4294901760
    %2372 = vmatpush1.msra.mxu0 %v2371
    %2373 = vmatprep.subr.mxu0 0.0
    %v2374 = vand.u32 %v1893, 4294901760
    %2375 = vmatpush1.msra.mxu0 %v2374
    %2376 = vmatprep.subr.mxu0 0.0
    %v2377 = vand.u32 %v1894, 4294901760
    %2378 = vmatpush1.msra.mxu0 %v2377
    %2379 = vmatprep.subr.mxu0 0.0
    %v2380 = vand.u32 %v1895, 4294901760
    %2381 = vmatpush1.msra.mxu0 %v2380
    %2382 = vmatprep.subr.mxu0 0.0
    %v2383 = vand.u32 %v1896, 4294901760
    %2384 = vmatpush1.msra.mxu0 %v2383
    %2385 = vmatprep.subr.mxu0 0.0
    %2386 = vmatpush1.msra.mxu0 0.0
    %2387 = vmatprep.subr.mxu0 0.0
    %2388 = vmatpush1.msra.mxu0 0.0
    %2389 = vmatprep.subr.mxu0 0.0
    %2390 = vmatpush1.msra.mxu0 0.0
    %2391 = vmatprep.subr.mxu0 0.0
    %2392 = vmatpush1.msra.mxu0 0.0
    %2393 = vmatprep.subr.mxu0 0.0
    %2394 = vmatpush1.msra.mxu0 0.0
    %2395 = vmatprep.subr.mxu0 0.0
    %2396 = vmatpush1.msra.mxu0 0.0
    %2397 = vmatprep.subr.mxu0 0.0
    %2398 = vmatpush1.msra.mxu0 0.0
    %2399 = vmatprep.subr.mxu0 0.0
    %2400 = vmatpush1.msra.mxu0 0.0
    %2401 = vmatprep.subr.mxu0 0.0
    %2402 = vmatpush1.msra.mxu0 0.0
    %2403 = vmatprep.subr.mxu0 0.0
    %2404 = vmatpush1.msra.mxu0 0.0
    %2405 = vmatprep.subr.mxu0 0.0
    %2406 = vmatpush1.msra.mxu0 0.0
    %2407 = vmatprep.subr.mxu0 0.0
    %2408 = vmatpush1.msra.mxu0 0.0
    %2409 = vmatprep.subr.mxu0 0.0
    %2410 = vmatpush1.msra.mxu0 0.0
    %2411 = vmatprep.subr.mxu0 0.0
    %2412 = vmatpush1.msra.mxu0 0.0
    %2413 = vmatprep.subr.mxu0 0.0
    %2414 = vmatpush1.msra.mxu0 0.0
    %2415 = vmatprep.subr.mxu0 0.0
    %2416 = vmatpush1.msra.mxu0 0.0
    %2417 = vmatprep.subr.mxu0 0.0
    %2418 = vmatpush1.msra.mxu0 0.0
    %2419 = vmatprep.subr.mxu0 0.0
    %2420 = vmatpush1.msra.mxu0 0.0
    %2421 = vmatprep.subr.mxu0 0.0
    %2422 = vmatpush1.msra.mxu0 0.0
    %2423 = vmatprep.subr.mxu0 0.0
    %2424 = vmatpush1.msra.mxu0 0.0
    %2425 = vmatprep.subr.mxu0 0.0
    %2426 = vmatpush1.msra.mxu0 0.0
    %2427 = vmatprep.subr.mxu0 0.0
    %2428 = vmatpush1.msra.mxu0 0.0
    %2429 = vmatprep.subr.mxu0 0.0
    %2430 = vmatpush1.msra.mxu0 0.0
    %2431 = vmatprep.subr.mxu0 0.0
    %2432 = vmatpush1.msra.mxu0 0.0
    %2433 = vmatprep.mubr.f32.mxu0 0.0
    %v2434 = vand.u32 %v1901, 4294901760
    %2435 = vmatmul.mubr.f32.gmra.mrb[0].mxu0 %v2434
    %v2436 = vpop.f32.mrb[0].mxu0
    %v2437 = vadd.f32 %v2358, %v2436
    %v2438 = vpop.f32.mrb[0].mxu0
    %2439 = vdwg.mxu0
    %vm2440 = vcmask 450560
    %2441 = vst.msk [vmem:[#allocation3] sm:$0x1] %vm2440, %v2437
    // Predicated region
    $region30: #{tpu_custom_call.1} parent=1 // pred_check
      _
    $region31: #{tpu_custom_call.1} parent=1 // pred_check_branch
      %2443 = sbr.rel (0) target = $region33
    $region32: #{tpu_custom_call.1} parent=1 // pred_region
      %s2445 = ssub.s32 16, 16
      %2446 = vsyncadd [#allocation4], %s2445
      %s2448 = sshll.u32 [#allocation3], 4
      %s2449 = int_to_ptr.vmem [resolvable:$true] %s2448
      %2451 = dma.vmem_to_hbm [thread:$0]  %s2449, 16, %s7, [#allocation4]
    $region33: #{tpu_custom_call.1} parent=1 // pred_fallthru
      _
    // Predicated region
    $region34: #{tpu_custom_call.1} parent=1 // pred_check
      _
    $region35: #{tpu_custom_call.1} parent=1 // pred_check_branch
      %2453 = sbr.rel (0) target = $region37
    $region36: #{tpu_custom_call.1} parent=1 // pred_region
      %2454 = dma.done [#allocation4], 16
    $region37: #{tpu_custom_call.1} parent=1 // pred_fallthru
      _
    %2455 = vsyncpa [#allocation4], 1

</llo_original>
